<compile_context>
chip_gen: v7x
topology: tpu7x:2x2x1
jax: 0.10.0
libtpu: 0.0.40
codegen_flags: <defaults>
</compile_context>

<pallas_src>
import functools
import math

import jax
import jax.numpy as jnp
from jax import lax
from jax.experimental import pallas as pl
from jax.experimental.pallas import tpu as pltpu


def _round_up(x, m):
    return (x + m - 1) // m * m


def _rnn_kernel(num_layers, seq_len, batch_tile, hidden_pad, x_ref, *refs):
    # refs layout: [w_ih_0, w_hh_0, b_0, ..., w_ih_{L-1}, w_hh_{L-1}, b_{L-1},
    #               w_fc, b_fc, out_ref, xw_buf, seq_buf]
    seq_buf = refs[-1]      # VMEM (S*TB, Hp) bf16: current layer's output sequence
    xw_buf = refs[-2]       # VMEM (S*TB, Hp) f32 : hoisted input projection (+ bias)
    out_ref = refs[-3]      # (TB, Op) f32
    b_fc = refs[-4]         # (1, Op)  f32
    w_fc = refs[-5]         # (Hp, Op) bf16
    layer_refs = refs[:-5]

    S, TB, Hp = seq_len, batch_tile, hidden_pad
    h0 = jnp.zeros((TB, Hp), jnp.float32)

    # Keep W_hh resident in vregs only while it fits well inside the 64 x 4KiB vreg file;
    # otherwise stream it from VMEM each step so the unrolled loop doesn't spill.
    hoist_whh = (Hp * Hp * 2) <= 8 * 4096        # <= 8 vregs in bf16

    # Bounded unroll: full unroll for short sequences keeps tanh (EUP), xw vld and the MXU
    # push co-issued; longer sequences use unroll=8 to bound live ranges / compile time.
    unroll = True if S <= 32 else 8

    def run_layer(x2d, w_ih_ref, w_hh_ref, b_ref, write_seq):
        # ---- hoisted non-recurrent projection: one fat MXU matmul per layer ----
        xw = jnp.dot(x2d, w_ih_ref[...], preferred_element_type=jnp.float32)
        xw_buf[...] = xw + b_ref[...]           # bias broadcast happens once per layer

        w_hh_val = w_hh_ref[...] if hoist_whh else None

        def step(t, h):
            row = pl.multiple_of(t * TB, TB)
            w_hh = w_hh_val if hoist_whh else w_hh_ref[...]
            pre = jnp.dot(h.astype(jnp.bfloat16), w_hh,
                          preferred_element_type=jnp.float32)
            h_new = jnp.tanh(pre + xw_buf[pl.ds(row, TB), :])
            if write_seq:                        # last layer carries h; no seq stores
                seq_buf[pl.ds(row, TB), :] = h_new.astype(seq_buf.dtype)
            return h_new

        return lax.fori_loop(0, S, step, h0, unroll=unroll)

    # Layer 0 reads the x tile; layers 1..L-1 read seq_buf (previous layer's output).
    # seq_buf is fully consumed by the hoisted projection (into xw_buf, which every step
    # reads) before the recurrence overwrites it in place, so the in-place reuse is safe.
    h_last = run_layer(x_ref[0], layer_refs[0], layer_refs[1], layer_refs[2],
                       write_seq=num_layers > 1)
    for l in range(1, num_layers):
        w_ih, w_hh, b = layer_refs[3 * l:3 * l + 3]
        h_last = run_layer(seq_buf[...], w_ih, w_hh, b,
                           write_seq=l < num_layers - 1)

    # fc on out[:, -1, :] (carried in registers), lane-dense (Op is a multiple of 128).
    out_ref[...] = (
        jnp.dot(h_last.astype(jnp.bfloat16), w_fc[...],
                preferred_element_type=jnp.float32) + b_fc[...]
    )


def init_rnn_params(key, input_size, hidden_size, num_layers, output_dim):
    """Deterministic init mimicking PyTorch's uniform(-1/sqrt(H), 1/sqrt(H))."""
    params = {}
    k = 1.0 / math.sqrt(hidden_size)
    for l in range(num_layers):
        in_dim = input_size if l == 0 else hidden_size
        key, k1, k2, k3, k4 = jax.random.split(key, 5)
        params[f"layer{l}"] = dict(
            w_ih=jax.random.uniform(k1, (hidden_size, in_dim), jnp.float32, -k, k),
            w_hh=jax.random.uniform(k2, (hidden_size, hidden_size), jnp.float32, -k, k),
            b_ih=jax.random.uniform(k3, (hidden_size,), jnp.float32, -k, k),
            b_hh=jax.random.uniform(k4, (hidden_size,), jnp.float32, -k, k),
        )
    key, k1, k2 = jax.random.split(key, 3)
    kf = 1.0 / math.sqrt(hidden_size)
    params["fc"] = dict(
        w=jax.random.uniform(k1, (output_dim, hidden_size), jnp.float32, -kf, kf),
        b=jax.random.uniform(k2, (output_dim,), jnp.float32, -kf, kf),
    )
    return params


def _weight_spec(shape):
    """Constant-per-grid weight block; single-buffered so the resident weight footprint
    is not doubled by the default 2-deep pipelining across batch tiles."""
    try:
        return pl.BlockSpec(shape, lambda b: (0, 0), pipeline_mode=pl.Buffered(1))
    except (TypeError, AttributeError):   # older jax without pipeline_mode / Buffered
        return pl.BlockSpec(shape, lambda b: (0, 0))


def _vmem_budget_bytes(needed):
    """Generation-aware VMEM cap: capacity minus ~16 MiB headroom for compiler scratch
    (≈48 MiB on v7x's 64 MiB, ≈112 MiB on v5e/v6e's 128 MiB)."""
    try:
        cap = int(pltpu.get_tpu_info().vmem_capacity_bytes)
    except Exception:
        cap = 64 << 20                              # conservative (v7x-sized) fallback
    usable = max(32 << 20, cap - (16 << 20))
    return int(min(usable, max(4 << 20, needed)))


def rnn_forward(x, params, *, hidden_size, num_layers, output_dim, batch_tile=None):
    """x: (B, S, input_size) float32 (batch_first, like the PyTorch module)."""
    B, S, I = x.shape
    H, O = hidden_size, output_dim
    Hp = _round_up(H, 128)          # lane-dense hidden dim
    Op = _round_up(O, 128)          # lane-dense fc output
    Bp = _round_up(B, 16)           # 16-row alignment: bf16 seq_buf stores are full vst

    if batch_tile is None:
        # One batch tile keeps each recurrent step as a single fat matmul (best on the
        # single-TC v5e/v6e). On v7x, pass batch_tile=Bp//2 (kept >=64 and a multiple of
        # 16) to shard the independent sequences across both TensorCores via the
        # "parallel" grid axis below; never split into more than 2 tiles.
        batch_tile = Bp
    assert Bp % batch_tile == 0 and batch_tile % 16 == 0
    TB = batch_tile
    n_tiles = Bp // TB

    # (B,S,I) -> time-major, batch-padded, bf16, grouped by batch tile:
    # (n_tiles, S*TB, I) with rows ordered (t, tb) inside each tile.
    x_t = jnp.transpose(x, (1, 0, 2))
    x_t = jnp.pad(x_t, ((0, 0), (0, Bp - B), (0, 0))).astype(jnp.bfloat16)
    x_t = x_t.reshape(S, n_tiles, TB, I).transpose(1, 0, 2, 3).reshape(n_tiles, S * TB, I)

    def padded(w, rows, cols, dtype):
        r, c = w.shape
        return jnp.zeros((rows, cols), dtype).at[:r, :c].set(w.astype(dtype))

    flat_w = []
    for l in range(num_layers):
        p = params[f"layer{l}"]
        in_rows = I if l == 0 else Hp
        flat_w += [
            padded(p["w_ih"].T, in_rows, Hp, jnp.bfloat16),            # (K, Hp)
            padded(p["w_hh"].T, Hp, Hp, jnp.bfloat16),                 # (Hp, Hp)
            padded((p["b_ih"] + p["b_hh"])[None, :], 1, Hp, jnp.float32),
        ]
    flat_w += [
        padded(params["fc"]["w"].T, Hp, Op, jnp.bfloat16),             # (Hp, Op)
        padded(params["fc"]["b"][None, :], 1, Op, jnp.float32),        # (1, Op)
    ]

    in_specs = [pl.BlockSpec((1, S * TB, I), lambda b: (b, 0, 0))]
    in_specs += [_weight_spec(a.shape) for a in flat_w]

    # VMEM estimate: single-buffered weights + double-buffered x/out tiles + scratch.
    weight_bytes = sum(int(a.size) * a.dtype.itemsize for a in flat_w)
    io_bytes = 2 * (S * TB * I * 2 + TB * Op * 4)
    scratch_bytes = S * TB * Hp * (4 + 2)
    vmem_limit = _vmem_budget_bytes(weight_bytes + io_bytes + scratch_bytes + (2 << 20))

    out_pad = pl.pallas_call(
        functools.partial(_rnn_kernel, num_layers, S, TB, Hp),
        out_shape=jax.ShapeDtypeStruct((Bp, Op), jnp.float32),
        grid=(n_tiles,),
        in_specs=in_specs,
        out_specs=pl.BlockSpec((TB, Op), lambda b: (b, 0)),
        scratch_shapes=[
            pltpu.VMEM((S * TB, Hp), jnp.float32),    # xw_buf: hoisted input projection
            pltpu.VMEM((S * TB, Hp), jnp.bfloat16),   # seq_buf: layer output sequence
        ],
        compiler_params=pltpu.CompilerParams(
            dimension_semantics=("parallel",),        # batch tiles independent (v7x megacore)
            vmem_limit_bytes=vmem_limit,
        ),
    )(x_t, *flat_w)

    return out_pad[:B, :O]


def rnn_forward_ref(x, params, *, hidden_size, num_layers, output_dim):
    """Pure-JAX f32 reference with identical semantics, for verification."""
    B, S, _ = x.shape
    seq = x
    for l in range(num_layers):
        p = params[f"layer{l}"]
        h = jnp.zeros((B, hidden_size), jnp.float32)
        outs = []
        for t in range(S):
            h = jnp.tanh(seq[:, t, :] @ p["w_ih"].T + p["b_ih"] + h @ p["w_hh"].T + p["b_hh"])
            outs.append(h)
        seq = jnp.stack(outs, axis=1)
    last = seq[:, -1, :]
    return last @ params["fc"]["w"].T + params["fc"]["b"]


if __name__ == "__main__":
    batch, seq, input_size = 8, 8, 16
    hidden_size, num_layers, output_dim = 32, 2, 4

    key = jax.random.PRNGKey(0)
    kx, kp = jax.random.split(key)
    x = jax.random.normal(kx, (batch, seq, input_size), jnp.float32)
    params = init_rnn_params(kp, input_size, hidden_size, num_layers, output_dim)

    out = rnn_forward(x, params, hidden_size=hidden_size,
                      num_layers=num_layers, output_dim=output_dim)
    out = jax.block_until_ready(out)

    ref = rnn_forward_ref(x, params, hidden_size=hidden_size,
                          num_layers=num_layers, output_dim=output_dim)
    assert out.shape == (batch, output_dim)
    # bf16 matmul inputs (f32 accumulation / f32 tanh) => looser tolerance than pure f32.
    # NOTE: hidden state is rounded to bf16 each step; re-validate for long sequences.
    err = float(jnp.max(jnp.abs(out - ref)))
    assert jnp.allclose(out, ref, atol=2e-2, rtol=2e-2), f"mismatch vs reference (max abs err {err})"

    print("KERNEL_OK")
</pallas_src>

<mosaic_0001>
module attributes {stable_mosaic.version = 11 : i64} {
  func.func @_rnn_kernel(%arg0: i32, %arg1: memref<1x128x16xbf16, #tpu.memory_space<vmem>>, %arg2: memref<16x128xbf16, #tpu.memory_space<vmem>>, %arg3: memref<128x128xbf16, #tpu.memory_space<vmem>>, %arg4: memref<1x128xf32, #tpu.memory_space<vmem>>, %arg5: memref<128x128xbf16, #tpu.memory_space<vmem>>, %arg6: memref<128x128xbf16, #tpu.memory_space<vmem>>, %arg7: memref<1x128xf32, #tpu.memory_space<vmem>>, %arg8: memref<128x128xbf16, #tpu.memory_space<vmem>>, %arg9: memref<1x128xf32, #tpu.memory_space<vmem>>, %arg10: memref<16x128xf32, #tpu.memory_space<vmem>>, %arg11: memref<128x128xf32, #tpu.memory_space<vmem>>, %arg12: memref<128x128xbf16, #tpu.memory_space<vmem>>) attributes {dimension_semantics = [#tpu.dimension_semantics<parallel>], iteration_bounds = array<i64: 1>, scalar_prefetch = 0 : i64, scratch_operands = 2 : i64, tpu.core_type = #tpu.core_type<tc>, window_params = [{transform_indices = @transform_0, window_bounds = array<i64: 1, 128, 16>}, {pipeline_mode = #tpu.pipeline_mode<synchronous>, transform_indices = @transform_1, window_bounds = array<i64: 16, 128>}, {pipeline_mode = #tpu.pipeline_mode<synchronous>, transform_indices = @transform_2, window_bounds = array<i64: 128, 128>}, {pipeline_mode = #tpu.pipeline_mode<synchronous>, transform_indices = @transform_3, window_bounds = array<i64: 1, 128>}, {pipeline_mode = #tpu.pipeline_mode<synchronous>, transform_indices = @transform_4, window_bounds = array<i64: 128, 128>}, {pipeline_mode = #tpu.pipeline_mode<synchronous>, transform_indices = @transform_5, window_bounds = array<i64: 128, 128>}, {pipeline_mode = #tpu.pipeline_mode<synchronous>, transform_indices = @transform_6, window_bounds = array<i64: 1, 128>}, {pipeline_mode = #tpu.pipeline_mode<synchronous>, transform_indices = @transform_7, window_bounds = array<i64: 128, 128>}, {pipeline_mode = #tpu.pipeline_mode<synchronous>, transform_indices = @transform_8, window_bounds = array<i64: 1, 128>}, {transform_indices = @transform_9, window_bounds = array<i64: 16, 128>}]} {
    %cst = arith.constant 0.000000e+00 : f32
    %0 = vector.broadcast %cst : f32 to vector<16x128xf32>
    %c0 = arith.constant 0 : index
    %c0_0 = arith.constant 0 : index
    %c0_1 = arith.constant 0 : index
    %1 = vector.load %arg1[%c0, %c0_0, %c0_1] : memref<1x128x16xbf16, #tpu.memory_space<vmem>>, vector<1x128x16xbf16>
    %2 = vector.shape_cast %1 : vector<1x128x16xbf16> to vector<128x16xbf16>
    %c0_2 = arith.constant 0 : index
    %c0_3 = arith.constant 0 : index
    %3 = vector.load %arg2[%c0_2, %c0_3] : memref<16x128xbf16, #tpu.memory_space<vmem>>, vector<16x128xbf16>
    %cst_4 = arith.constant dense<0.000000e+00> : vector<128x128xf32>
    %4 = tpu.matmul %2, %3, %cst_4 {dimension_numbers = #tpu.dot_dimension_numbers<[1], [0], [0], [1], [0, 0, 1, 1], [], []>} : vector<128x16xbf16>, vector<16x128xbf16>, vector<128x128xf32> -> vector<128x128xf32>
    %c0_5 = arith.constant 0 : index
    %c0_6 = arith.constant 0 : index
    %5 = vector.load %arg4[%c0_5, %c0_6] : memref<1x128xf32, #tpu.memory_space<vmem>>, vector<1x128xf32>
    %6 = vector.broadcast %5 : vector<1x128xf32> to vector<128x128xf32>
    %7 = arith.addf %4, %6 : vector<128x128xf32>
    %c0_7 = arith.constant 0 : index
    %c0_8 = arith.constant 0 : index
    %8 = vector.load %arg11[%c0_7, %c0_8] : memref<128x128xf32, #tpu.memory_space<vmem>>, vector<128x128xf32>
    tpu.vector_store %arg11[%c0_7, %c0_8], %7 {strides = array<i32>} : memref<128x128xf32, #tpu.memory_space<vmem>>, vector<128x128xf32>,
    %c0_9 = arith.constant 0 : index
    %c0_10 = arith.constant 0 : index
    %9 = vector.load %arg3[%c0_9, %c0_10] : memref<128x128xbf16, #tpu.memory_space<vmem>>, vector<128x128xbf16>
    %c0_i32 = arith.constant 0 : i32
    %c16_i32 = arith.constant 16 : i32
    %10 = arith.muli %c0_i32, %c16_i32 : i32
    %11 = tpu.assume_multiple %10, 16 : i32
    %12 = arith.truncf %0 : vector<16x128xf32> to vector<16x128xbf16>
    %cst_11 = arith.constant dense<0.000000e+00> : vector<16x128xf32>
    %13 = tpu.matmul %12, %9, %cst_11 {dimension_numbers = #tpu.dot_dimension_numbers<[1], [0], [0], [1], [0, 0, 1, 1], [], []>} : vector<16x128xbf16>, vector<128x128xbf16>, vector<16x128xf32> -> vector<16x128xf32>
    %14 = arith.index_cast %11 : i32 to index
    %c0_12 = arith.constant 0 : index
    %15 = vector.load %arg11[%14, %c0_12] : memref<128x128xf32, #tpu.memory_space<vmem>>, vector<16x128xf32>
    %16 = arith.addf %13, %15 : vector<16x128xf32>
    %17 = math.tanh %16 : vector<16x128xf32>
    %18 = arith.truncf %17 : vector<16x128xf32> to vector<16x128xbf16>
    %19 = arith.index_cast %11 : i32 to index
    %c0_13 = arith.constant 0 : index
    %20 = vector.load %arg12[%19, %c0_13] : memref<128x128xbf16, #tpu.memory_space<vmem>>, vector<16x128xbf16>
    tpu.vector_store %arg12[%19, %c0_13], %18 {strides = array<i32>} : memref<128x128xbf16, #tpu.memory_space<vmem>>, vector<16x128xbf16>,
    %c1_i32 = arith.constant 1 : i32
    %c16_i32_14 = arith.constant 16 : i32
    %21 = arith.muli %c1_i32, %c16_i32_14 : i32
    %22 = tpu.assume_multiple %21, 16 : i32
    %23 = arith.truncf %17 : vector<16x128xf32> to vector<16x128xbf16>
    %cst_15 = arith.constant dense<0.000000e+00> : vector<16x128xf32>
    %24 = tpu.matmul %23, %9, %cst_15 {dimension_numbers = #tpu.dot_dimension_numbers<[1], [0], [0], [1], [0, 0, 1, 1], [], []>} : vector<16x128xbf16>, vector<128x128xbf16>, vector<16x128xf32> -> vector<16x128xf32>
    %25 = arith.index_cast %22 : i32 to index
    %c0_16 = arith.constant 0 : index
    %26 = vector.load %arg11[%25, %c0_16] : memref<128x128xf32, #tpu.memory_space<vmem>>, vector<16x128xf32>
    %27 = arith.addf %24, %26 : vector<16x128xf32>
    %28 = math.tanh %27 : vector<16x128xf32>
    %29 = arith.truncf %28 : vector<16x128xf32> to vector<16x128xbf16>
    %30 = arith.index_cast %22 : i32 to index
    %c0_17 = arith.constant 0 : index
    %31 = vector.load %arg12[%30, %c0_17] : memref<128x128xbf16, #tpu.memory_space<vmem>>, vector<16x128xbf16>
    tpu.vector_store %arg12[%30, %c0_17], %29 {strides = array<i32>} : memref<128x128xbf16, #tpu.memory_space<vmem>>, vector<16x128xbf16>,
    %c2_i32 = arith.constant 2 : i32
    %c16_i32_18 = arith.constant 16 : i32
    %32 = arith.muli %c2_i32, %c16_i32_18 : i32
    %33 = tpu.assume_multiple %32, 16 : i32
    %34 = arith.truncf %28 : vector<16x128xf32> to vector<16x128xbf16>
    %cst_19 = arith.constant dense<0.000000e+00> : vector<16x128xf32>
    %35 = tpu.matmul %34, %9, %cst_19 {dimension_numbers = #tpu.dot_dimension_numbers<[1], [0], [0], [1], [0, 0, 1, 1], [], []>} : vector<16x128xbf16>, vector<128x128xbf16>, vector<16x128xf32> -> vector<16x128xf32>
    %36 = arith.index_cast %33 : i32 to index
    %c0_20 = arith.constant 0 : index
    %37 = vector.load %arg11[%36, %c0_20] : memref<128x128xf32, #tpu.memory_space<vmem>>, vector<16x128xf32>
    %38 = arith.addf %35, %37 : vector<16x128xf32>
    %39 = math.tanh %38 : vector<16x128xf32>
    %40 = arith.truncf %39 : vector<16x128xf32> to vector<16x128xbf16>
    %41 = arith.index_cast %33 : i32 to index
    %c0_21 = arith.constant 0 : index
    %42 = vector.load %arg12[%41, %c0_21] : memref<128x128xbf16, #tpu.memory_space<vmem>>, vector<16x128xbf16>
    tpu.vector_store %arg12[%41, %c0_21], %40 {strides = array<i32>} : memref<128x128xbf16, #tpu.memory_space<vmem>>, vector<16x128xbf16>,
    %c3_i32 = arith.constant 3 : i32
    %c16_i32_22 = arith.constant 16 : i32
    %43 = arith.muli %c3_i32, %c16_i32_22 : i32
    %44 = tpu.assume_multiple %43, 16 : i32
    %45 = arith.truncf %39 : vector<16x128xf32> to vector<16x128xbf16>
    %cst_23 = arith.constant dense<0.000000e+00> : vector<16x128xf32>
    %46 = tpu.matmul %45, %9, %cst_23 {dimension_numbers = #tpu.dot_dimension_numbers<[1], [0], [0], [1], [0, 0, 1, 1], [], []>} : vector<16x128xbf16>, vector<128x128xbf16>, vector<16x128xf32> -> vector<16x128xf32>
    %47 = arith.index_cast %44 : i32 to index
    %c0_24 = arith.constant 0 : index
    %48 = vector.load %arg11[%47, %c0_24] : memref<128x128xf32, #tpu.memory_space<vmem>>, vector<16x128xf32>
    %49 = arith.addf %46, %48 : vector<16x128xf32>
    %50 = math.tanh %49 : vector<16x128xf32>
    %51 = arith.truncf %50 : vector<16x128xf32> to vector<16x128xbf16>
    %52 = arith.index_cast %44 : i32 to index
    %c0_25 = arith.constant 0 : index
    %53 = vector.load %arg12[%52, %c0_25] : memref<128x128xbf16, #tpu.memory_space<vmem>>, vector<16x128xbf16>
    tpu.vector_store %arg12[%52, %c0_25], %51 {strides = array<i32>} : memref<128x128xbf16, #tpu.memory_space<vmem>>, vector<16x128xbf16>,
    %c4_i32 = arith.constant 4 : i32
    %c16_i32_26 = arith.constant 16 : i32
    %54 = arith.muli %c4_i32, %c16_i32_26 : i32
    %55 = tpu.assume_multiple %54, 16 : i32
    %56 = arith.truncf %50 : vector<16x128xf32> to vector<16x128xbf16>
    %cst_27 = arith.constant dense<0.000000e+00> : vector<16x128xf32>
    %57 = tpu.matmul %56, %9, %cst_27 {dimension_numbers = #tpu.dot_dimension_numbers<[1], [0], [0], [1], [0, 0, 1, 1], [], []>} : vector<16x128xbf16>, vector<128x128xbf16>, vector<16x128xf32> -> vector<16x128xf32>
    %58 = arith.index_cast %55 : i32 to index
    %c0_28 = arith.constant 0 : index
    %59 = vector.load %arg11[%58, %c0_28] : memref<128x128xf32, #tpu.memory_space<vmem>>, vector<16x128xf32>
    %60 = arith.addf %57, %59 : vector<16x128xf32>
    %61 = math.tanh %60 : vector<16x128xf32>
    %62 = arith.truncf %61 : vector<16x128xf32> to vector<16x128xbf16>
    %63 = arith.index_cast %55 : i32 to index
    %c0_29 = arith.constant 0 : index
    %64 = vector.load %arg12[%63, %c0_29] : memref<128x128xbf16, #tpu.memory_space<vmem>>, vector<16x128xbf16>
    tpu.vector_store %arg12[%63, %c0_29], %62 {strides = array<i32>} : memref<128x128xbf16, #tpu.memory_space<vmem>>, vector<16x128xbf16>,
    %c5_i32 = arith.constant 5 : i32
    %c16_i32_30 = arith.constant 16 : i32
    %65 = arith.muli %c5_i32, %c16_i32_30 : i32
    %66 = tpu.assume_multiple %65, 16 : i32
    %67 = arith.truncf %61 : vector<16x128xf32> to vector<16x128xbf16>
    %cst_31 = arith.constant dense<0.000000e+00> : vector<16x128xf32>
    %68 = tpu.matmul %67, %9, %cst_31 {dimension_numbers = #tpu.dot_dimension_numbers<[1], [0], [0], [1], [0, 0, 1, 1], [], []>} : vector<16x128xbf16>, vector<128x128xbf16>, vector<16x128xf32> -> vector<16x128xf32>
    %69 = arith.index_cast %66 : i32 to index
    %c0_32 = arith.constant 0 : index
    %70 = vector.load %arg11[%69, %c0_32] : memref<128x128xf32, #tpu.memory_space<vmem>>, vector<16x128xf32>
    %71 = arith.addf %68, %70 : vector<16x128xf32>
    %72 = math.tanh %71 : vector<16x128xf32>
    %73 = arith.truncf %72 : vector<16x128xf32> to vector<16x128xbf16>
    %74 = arith.index_cast %66 : i32 to index
    %c0_33 = arith.constant 0 : index
    %75 = vector.load %arg12[%74, %c0_33] : memref<128x128xbf16, #tpu.memory_space<vmem>>, vector<16x128xbf16>
    tpu.vector_store %arg12[%74, %c0_33], %73 {strides = array<i32>} : memref<128x128xbf16, #tpu.memory_space<vmem>>, vector<16x128xbf16>,
    %c6_i32 = arith.constant 6 : i32
    %c16_i32_34 = arith.constant 16 : i32
    %76 = arith.muli %c6_i32, %c16_i32_34 : i32
    %77 = tpu.assume_multiple %76, 16 : i32
    %78 = arith.truncf %72 : vector<16x128xf32> to vector<16x128xbf16>
    %cst_35 = arith.constant dense<0.000000e+00> : vector<16x128xf32>
    %79 = tpu.matmul %78, %9, %cst_35 {dimension_numbers = #tpu.dot_dimension_numbers<[1], [0], [0], [1], [0, 0, 1, 1], [], []>} : vector<16x128xbf16>, vector<128x128xbf16>, vector<16x128xf32> -> vector<16x128xf32>
    %80 = arith.index_cast %77 : i32 to index
    %c0_36 = arith.constant 0 : index
    %81 = vector.load %arg11[%80, %c0_36] : memref<128x128xf32, #tpu.memory_space<vmem>>, vector<16x128xf32>
    %82 = arith.addf %79, %81 : vector<16x128xf32>
    %83 = math.tanh %82 : vector<16x128xf32>
    %84 = arith.truncf %83 : vector<16x128xf32> to vector<16x128xbf16>
    %85 = arith.index_cast %77 : i32 to index
    %c0_37 = arith.constant 0 : index
    %86 = vector.load %arg12[%85, %c0_37] : memref<128x128xbf16, #tpu.memory_space<vmem>>, vector<16x128xbf16>
    tpu.vector_store %arg12[%85, %c0_37], %84 {strides = array<i32>} : memref<128x128xbf16, #tpu.memory_space<vmem>>, vector<16x128xbf16>,
    %c7_i32 = arith.constant 7 : i32
    %c16_i32_38 = arith.constant 16 : i32
    %87 = arith.muli %c7_i32, %c16_i32_38 : i32
    %88 = tpu.assume_multiple %87, 16 : i32
    %89 = arith.truncf %83 : vector<16x128xf32> to vector<16x128xbf16>
    %cst_39 = arith.constant dense<0.000000e+00> : vector<16x128xf32>
    %90 = tpu.matmul %89, %9, %cst_39 {dimension_numbers = #tpu.dot_dimension_numbers<[1], [0], [0], [1], [0, 0, 1, 1], [], []>} : vector<16x128xbf16>, vector<128x128xbf16>, vector<16x128xf32> -> vector<16x128xf32>
    %91 = arith.index_cast %88 : i32 to index
    %c0_40 = arith.constant 0 : index
    %92 = vector.load %arg11[%91, %c0_40] : memref<128x128xf32, #tpu.memory_space<vmem>>, vector<16x128xf32>
    %93 = arith.addf %90, %92 : vector<16x128xf32>
    %94 = math.tanh %93 : vector<16x128xf32>
    %95 = arith.truncf %94 : vector<16x128xf32> to vector<16x128xbf16>
    %96 = arith.index_cast %88 : i32 to index
    %c0_41 = arith.constant 0 : index
    %97 = vector.load %arg12[%96, %c0_41] : memref<128x128xbf16, #tpu.memory_space<vmem>>, vector<16x128xbf16>
    tpu.vector_store %arg12[%96, %c0_41], %95 {strides = array<i32>} : memref<128x128xbf16, #tpu.memory_space<vmem>>, vector<16x128xbf16>,
    %c8_i32 = arith.constant 8 : i32
    %c0_42 = arith.constant 0 : index
    %c0_43 = arith.constant 0 : index
    %98 = vector.load %arg12[%c0_42, %c0_43] : memref<128x128xbf16, #tpu.memory_space<vmem>>, vector<128x128xbf16>
    %c0_44 = arith.constant 0 : index
    %c0_45 = arith.constant 0 : index
    %99 = vector.load %arg5[%c0_44, %c0_45] : memref<128x128xbf16, #tpu.memory_space<vmem>>, vector<128x128xbf16>
    %cst_46 = arith.constant dense<0.000000e+00> : vector<128x128xf32>
    %100 = tpu.matmul %98, %99, %cst_46 {dimension_numbers = #tpu.dot_dimension_numbers<[1], [0], [0], [1], [0, 0, 1, 1], [], []>} : vector<128x128xbf16>, vector<128x128xbf16>, vector<128x128xf32> -> vector<128x128xf32>
    %c0_47 = arith.constant 0 : index
    %c0_48 = arith.constant 0 : index
    %101 = vector.load %arg7[%c0_47, %c0_48] : memref<1x128xf32, #tpu.memory_space<vmem>>, vector<1x128xf32>
    %102 = vector.broadcast %101 : vector<1x128xf32> to vector<128x128xf32>
    %103 = arith.addf %100, %102 : vector<128x128xf32>
    %c0_49 = arith.constant 0 : index
    %c0_50 = arith.constant 0 : index
    %104 = vector.load %arg11[%c0_49, %c0_50] : memref<128x128xf32, #tpu.memory_space<vmem>>, vector<128x128xf32>
    tpu.vector_store %arg11[%c0_49, %c0_50], %103 {strides = array<i32>} : memref<128x128xf32, #tpu.memory_space<vmem>>, vector<128x128xf32>,
    %c0_51 = arith.constant 0 : index
    %c0_52 = arith.constant 0 : index
    %105 = vector.load %arg6[%c0_51, %c0_52] : memref<128x128xbf16, #tpu.memory_space<vmem>>, vector<128x128xbf16>
    %c0_i32_53 = arith.constant 0 : i32
    %c16_i32_54 = arith.constant 16 : i32
    %106 = arith.muli %c0_i32_53, %c16_i32_54 : i32
    %107 = tpu.assume_multiple %106, 16 : i32
    %108 = arith.truncf %0 : vector<16x128xf32> to vector<16x128xbf16>
    %cst_55 = arith.constant dense<0.000000e+00> : vector<16x128xf32>
    %109 = tpu.matmul %108, %105, %cst_55 {dimension_numbers = #tpu.dot_dimension_numbers<[1], [0], [0], [1], [0, 0, 1, 1], [], []>} : vector<16x128xbf16>, vector<128x128xbf16>, vector<16x128xf32> -> vector<16x128xf32>
    %110 = arith.index_cast %107 : i32 to index
    %c0_56 = arith.constant 0 : index
    %111 = vector.load %arg11[%110, %c0_56] : memref<128x128xf32, #tpu.memory_space<vmem>>, vector<16x128xf32>
    %112 = arith.addf %109, %111 : vector<16x128xf32>
    %113 = math.tanh %112 : vector<16x128xf32>
    %c1_i32_57 = arith.constant 1 : i32
    %c16_i32_58 = arith.constant 16 : i32
    %114 = arith.muli %c1_i32_57, %c16_i32_58 : i32
    %115 = tpu.assume_multiple %114, 16 : i32
    %116 = arith.truncf %113 : vector<16x128xf32> to vector<16x128xbf16>
    %cst_59 = arith.constant dense<0.000000e+00> : vector<16x128xf32>
    %117 = tpu.matmul %116, %105, %cst_59 {dimension_numbers = #tpu.dot_dimension_numbers<[1], [0], [0], [1], [0, 0, 1, 1], [], []>} : vector<16x128xbf16>, vector<128x128xbf16>, vector<16x128xf32> -> vector<16x128xf32>
    %118 = arith.index_cast %115 : i32 to index
    %c0_60 = arith.constant 0 : index
    %119 = vector.load %arg11[%118, %c0_60] : memref<128x128xf32, #tpu.memory_space<vmem>>, vector<16x128xf32>
    %120 = arith.addf %117, %119 : vector<16x128xf32>
    %121 = math.tanh %120 : vector<16x128xf32>
    %c2_i32_61 = arith.constant 2 : i32
    %c16_i32_62 = arith.constant 16 : i32
    %122 = arith.muli %c2_i32_61, %c16_i32_62 : i32
    %123 = tpu.assume_multiple %122, 16 : i32
    %124 = arith.truncf %121 : vector<16x128xf32> to vector<16x128xbf16>
    %cst_63 = arith.constant dense<0.000000e+00> : vector<16x128xf32>
    %125 = tpu.matmul %124, %105, %cst_63 {dimension_numbers = #tpu.dot_dimension_numbers<[1], [0], [0], [1], [0, 0, 1, 1], [], []>} : vector<16x128xbf16>, vector<128x128xbf16>, vector<16x128xf32> -> vector<16x128xf32>
    %126 = arith.index_cast %123 : i32 to index
    %c0_64 = arith.constant 0 : index
    %127 = vector.load %arg11[%126, %c0_64] : memref<128x128xf32, #tpu.memory_space<vmem>>, vector<16x128xf32>
    %128 = arith.addf %125, %127 : vector<16x128xf32>
    %129 = math.tanh %128 : vector<16x128xf32>
    %c3_i32_65 = arith.constant 3 : i32
    %c16_i32_66 = arith.constant 16 : i32
    %130 = arith.muli %c3_i32_65, %c16_i32_66 : i32
    %131 = tpu.assume_multiple %130, 16 : i32
    %132 = arith.truncf %129 : vector<16x128xf32> to vector<16x128xbf16>
    %cst_67 = arith.constant dense<0.000000e+00> : vector<16x128xf32>
    %133 = tpu.matmul %132, %105, %cst_67 {dimension_numbers = #tpu.dot_dimension_numbers<[1], [0], [0], [1], [0, 0, 1, 1], [], []>} : vector<16x128xbf16>, vector<128x128xbf16>, vector<16x128xf32> -> vector<16x128xf32>
    %134 = arith.index_cast %131 : i32 to index
    %c0_68 = arith.constant 0 : index
    %135 = vector.load %arg11[%134, %c0_68] : memref<128x128xf32, #tpu.memory_space<vmem>>, vector<16x128xf32>
    %136 = arith.addf %133, %135 : vector<16x128xf32>
    %137 = math.tanh %136 : vector<16x128xf32>
    %c4_i32_69 = arith.constant 4 : i32
    %c16_i32_70 = arith.constant 16 : i32
    %138 = arith.muli %c4_i32_69, %c16_i32_70 : i32
    %139 = tpu.assume_multiple %138, 16 : i32
    %140 = arith.truncf %137 : vector<16x128xf32> to vector<16x128xbf16>
    %cst_71 = arith.constant dense<0.000000e+00> : vector<16x128xf32>
    %141 = tpu.matmul %140, %105, %cst_71 {dimension_numbers = #tpu.dot_dimension_numbers<[1], [0], [0], [1], [0, 0, 1, 1], [], []>} : vector<16x128xbf16>, vector<128x128xbf16>, vector<16x128xf32> -> vector<16x128xf32>
    %142 = arith.index_cast %139 : i32 to index
    %c0_72 = arith.constant 0 : index
    %143 = vector.load %arg11[%142, %c0_72] : memref<128x128xf32, #tpu.memory_space<vmem>>, vector<16x128xf32>
    %144 = arith.addf %141, %143 : vector<16x128xf32>
    %145 = math.tanh %144 : vector<16x128xf32>
    %c5_i32_73 = arith.constant 5 : i32
    %c16_i32_74 = arith.constant 16 : i32
    %146 = arith.muli %c5_i32_73, %c16_i32_74 : i32
    %147 = tpu.assume_multiple %146, 16 : i32
    %148 = arith.truncf %145 : vector<16x128xf32> to vector<16x128xbf16>
    %cst_75 = arith.constant dense<0.000000e+00> : vector<16x128xf32>
    %149 = tpu.matmul %148, %105, %cst_75 {dimension_numbers = #tpu.dot_dimension_numbers<[1], [0], [0], [1], [0, 0, 1, 1], [], []>} : vector<16x128xbf16>, vector<128x128xbf16>, vector<16x128xf32> -> vector<16x128xf32>
    %150 = arith.index_cast %147 : i32 to index
    %c0_76 = arith.constant 0 : index
    %151 = vector.load %arg11[%150, %c0_76] : memref<128x128xf32, #tpu.memory_space<vmem>>, vector<16x128xf32>
    %152 = arith.addf %149, %151 : vector<16x128xf32>
    %153 = math.tanh %152 : vector<16x128xf32>
    %c6_i32_77 = arith.constant 6 : i32
    %c16_i32_78 = arith.constant 16 : i32
    %154 = arith.muli %c6_i32_77, %c16_i32_78 : i32
    %155 = tpu.assume_multiple %154, 16 : i32
    %156 = arith.truncf %153 : vector<16x128xf32> to vector<16x128xbf16>
    %cst_79 = arith.constant dense<0.000000e+00> : vector<16x128xf32>
    %157 = tpu.matmul %156, %105, %cst_79 {dimension_numbers = #tpu.dot_dimension_numbers<[1], [0], [0], [1], [0, 0, 1, 1], [], []>} : vector<16x128xbf16>, vector<128x128xbf16>, vector<16x128xf32> -> vector<16x128xf32>
    %158 = arith.index_cast %155 : i32 to index
    %c0_80 = arith.constant 0 : index
    %159 = vector.load %arg11[%158, %c0_80] : memref<128x128xf32, #tpu.memory_space<vmem>>, vector<16x128xf32>
    %160 = arith.addf %157, %159 : vector<16x128xf32>
    %161 = math.tanh %160 : vector<16x128xf32>
    %c7_i32_81 = arith.constant 7 : i32
    %c16_i32_82 = arith.constant 16 : i32
    %162 = arith.muli %c7_i32_81, %c16_i32_82 : i32
    %163 = tpu.assume_multiple %162, 16 : i32
    %164 = arith.truncf %161 : vector<16x128xf32> to vector<16x128xbf16>
    %cst_83 = arith.constant dense<0.000000e+00> : vector<16x128xf32>
    %165 = tpu.matmul %164, %105, %cst_83 {dimension_numbers = #tpu.dot_dimension_numbers<[1], [0], [0], [1], [0, 0, 1, 1], [], []>} : vector<16x128xbf16>, vector<128x128xbf16>, vector<16x128xf32> -> vector<16x128xf32>
    %166 = arith.index_cast %163 : i32 to index
    %c0_84 = arith.constant 0 : index
    %167 = vector.load %arg11[%166, %c0_84] : memref<128x128xf32, #tpu.memory_space<vmem>>, vector<16x128xf32>
    %168 = arith.addf %165, %167 : vector<16x128xf32>
    %169 = math.tanh %168 : vector<16x128xf32>
    %c8_i32_85 = arith.constant 8 : i32
    %170 = arith.truncf %169 : vector<16x128xf32> to vector<16x128xbf16>
    %c0_86 = arith.constant 0 : index
    %c0_87 = arith.constant 0 : index
    %171 = vector.load %arg8[%c0_86, %c0_87] : memref<128x128xbf16, #tpu.memory_space<vmem>>, vector<128x128xbf16>
    %cst_88 = arith.constant dense<0.000000e+00> : vector<16x128xf32>
    %172 = tpu.matmul %170, %171, %cst_88 {dimension_numbers = #tpu.dot_dimension_numbers<[1], [0], [0], [1], [0, 0, 1, 1], [], []>} : vector<16x128xbf16>, vector<128x128xbf16>, vector<16x128xf32> -> vector<16x128xf32>
    %c0_89 = arith.constant 0 : index
    %c0_90 = arith.constant 0 : index
    %173 = vector.load %arg9[%c0_89, %c0_90] : memref<1x128xf32, #tpu.memory_space<vmem>>, vector<1x128xf32>
    %174 = vector.broadcast %173 : vector<1x128xf32> to vector<16x128xf32>
    %175 = arith.addf %172, %174 : vector<16x128xf32>
    %c0_91 = arith.constant 0 : index
    %c0_92 = arith.constant 0 : index
    %176 = vector.load %arg10[%c0_91, %c0_92] : memref<16x128xf32, #tpu.memory_space<vmem>>, vector<16x128xf32>
    tpu.vector_store %arg10[%c0_91, %c0_92], %175 {strides = array<i32>} : memref<16x128xf32, #tpu.memory_space<vmem>>, vector<16x128xf32>,
    return
  }
  func.func @transform_0(%arg0: i32) -> (i32, i32, i32) {
    %c0_i32 = arith.constant 0 : i32
    %c0_i32_0 = arith.constant 0 : i32
    %c0_i32_1 = arith.constant 0 : i32
    return %arg0, %c0_i32, %c0_i32_0 : i32, i32, i32
  }
  func.func @transform_1(%arg0: i32) -> (i32, i32) {
    %c0_i32 = arith.constant 0 : i32
    %c0_i32_0 = arith.constant 0 : i32
    %c0_i32_1 = arith.constant 0 : i32
    return %c0_i32, %c0_i32_0 : i32, i32
  }
  func.func @transform_2(%arg0: i32) -> (i32, i32) {
    %c0_i32 = arith.constant 0 : i32
    %c0_i32_0 = arith.constant 0 : i32
    %c0_i32_1 = arith.constant 0 : i32
    return %c0_i32, %c0_i32_0 : i32, i32
  }
  func.func @transform_3(%arg0: i32) -> (i32, i32) {
    %c0_i32 = arith.constant 0 : i32
    %c0_i32_0 = arith.constant 0 : i32
    %c0_i32_1 = arith.constant 0 : i32
    return %c0_i32, %c0_i32_0 : i32, i32
  }
  func.func @transform_4(%arg0: i32) -> (i32, i32) {
    %c0_i32 = arith.constant 0 : i32
    %c0_i32_0 = arith.constant 0 : i32
    %c0_i32_1 = arith.constant 0 : i32
    return %c0_i32, %c0_i32_0 : i32, i32
  }
  func.func @transform_5(%arg0: i32) -> (i32, i32) {
    %c0_i32 = arith.constant 0 : i32
    %c0_i32_0 = arith.constant 0 : i32
    %c0_i32_1 = arith.constant 0 : i32
    return %c0_i32, %c0_i32_0 : i32, i32
  }
  func.func @transform_6(%arg0: i32) -> (i32, i32) {
    %c0_i32 = arith.constant 0 : i32
    %c0_i32_0 = arith.constant 0 : i32
    %c0_i32_1 = arith.constant 0 : i32
    return %c0_i32, %c0_i32_0 : i32, i32
  }
  func.func @transform_7(%arg0: i32) -> (i32, i32) {
    %c0_i32 = arith.constant 0 : i32
    %c0_i32_0 = arith.constant 0 : i32
    %c0_i32_1 = arith.constant 0 : i32
    return %c0_i32, %c0_i32_0 : i32, i32
  }
  func.func @transform_8(%arg0: i32) -> (i32, i32) {
    %c0_i32 = arith.constant 0 : i32
    %c0_i32_0 = arith.constant 0 : i32
    %c0_i32_1 = arith.constant 0 : i32
    return %c0_i32, %c0_i32_0 : i32, i32
  }
  func.func @transform_9(%arg0: i32) -> (i32, i32) {
    %c0_i32 = arith.constant 0 : i32
    %c0_i32_0 = arith.constant 0 : i32
    return %arg0, %c0_i32 : i32, i32
  }
}

</mosaic_0001>

<llo_original>
// kernel: tpu_custom_call.1
$region0: #{tpu_custom_call.1}
  #allocation0 [shape = 'u32[]', space=smem, size = 0x4, offset = 0x4, fixed_abs, tag = 'smem constant byte address 0x4 - core index']
  #allocation1 [shape = 'u32[144,128]{1,0:T(1,128)}', space=vmem, size = 0x12000, scoped, tag = 'internal scratch']
  #allocation2 [shape = 'f32[128,128]{1,0:T(8,128)}', space=vmem, size = 0x10000, scoped, tag = 'scratch operand']
  #allocation3 [shape = 'bf16[128,128]{1,0:T(16,128)(2,1)}', space=vmem, size = 0x8000, scoped, tag = 'scratch operand']
  %s0 = inlined_call_operand.vmem [shape: bf16[1,128,16], index: 0, kind: input, shape index: {}]
  %s1 = inlined_call_operand.vmem [shape: bf16[16,128], index: 1, kind: input, shape index: {}]
  %s2 = inlined_call_operand.vmem [shape: bf16[128,128], index: 2, kind: input, shape index: {}]
  %s3 = inlined_call_operand.vmem [shape: f32[1,128], index: 3, kind: input, shape index: {}]
  %s4 = inlined_call_operand.hbm [shape: bf16[128,128], index: 4, kind: input, shape index: {}]
  %s5 = inlined_call_operand.hbm [shape: bf16[128,128], index: 5, kind: input, shape index: {}]
  %s6 = inlined_call_operand.vmem [shape: f32[1,128], index: 6, kind: input, shape index: {}]
  %s7 = inlined_call_operand.hbm [shape: bf16[128,128], index: 7, kind: input, shape index: {}]
  %s8 = inlined_call_operand.vmem [shape: f32[1,128], index: 8, kind: input, shape index: {}]
  %s9 = inlined_call_operand.hbm [shape: f32[16,128], index: 9, kind: output, shape index: {}]
  %s10 = sld [smem:[#allocation0]]
  $region58: #{tpu_custom_call.1} parent=0
    _
  %s12 = ssub.s32 1, %s10
  %s13 = scalar_select 0, %s12, %s10
  $region1: #{tpu_custom_call.1} parent=0
    #allocation4 [shape = 'u8[32768]{0}', space=vmem, size = 0x8000, scoped, tag = 'input window, operand 4, single buffered']
    #allocation5 [shape = 's32[1]{0}', space=sflag, size = 0x4, scoped, tag = 'scoped memory for tpu_custom_call.1']
    #allocation6 [shape = 's32[1]{0}', space=sflag, size = 0x4, scoped, tag = 'scoped memory for tpu_custom_call.1']
    #allocation7 [shape = 'u8[32768]{0}', space=vmem, size = 0x8000, scoped, tag = 'input window, operand 5, single buffered']
    #allocation8 [shape = 's32[1]{0}', space=sflag, size = 0x4, scoped, tag = 'scoped memory for tpu_custom_call.1']
    #allocation9 [shape = 'u8[32768]{0}', space=vmem, size = 0x8000, scoped, tag = 'input window, operand 7, single buffered']
    #allocation10 [shape = 'u8[8192]{0}', space=vmem, size = 0x2000, scoped, tag = 'output window, operand 0, single buffered']
    %14 = vsyncpa [#allocation5], 0
    %15 = vsyncpa [#allocation8], 0
    %16 = vsyncpa [#allocation6], 0
    // Predicated region
    $region2: #{tpu_custom_call.1} parent=1 // pred_check
      _
    $region3: #{tpu_custom_call.1} parent=1 // pred_check_branch
      %18 = sbr.rel (0) target = $region5
    $region4: #{tpu_custom_call.1} parent=1 // pred_region
      _
    $region5: #{tpu_custom_call.1} parent=1 // pred_fallthru
      _
    // Predicated region
    $region6: #{tpu_custom_call.1} parent=1 // pred_check
      _
    $region7: #{tpu_custom_call.1} parent=1 // pred_check_branch
      %20 = sbr.rel (0) target = $region9
    $region8: #{tpu_custom_call.1} parent=1 // pred_region
      _
    $region9: #{tpu_custom_call.1} parent=1 // pred_fallthru
      _
    // Predicated region
    $region10: #{tpu_custom_call.1} parent=1 // pred_check
      _
    $region11: #{tpu_custom_call.1} parent=1 // pred_check_branch
      %22 = sbr.rel (0) target = $region13
    $region12: #{tpu_custom_call.1} parent=1 // pred_region
      _
    $region13: #{tpu_custom_call.1} parent=1 // pred_fallthru
      _
    // Predicated region
    $region14: #{tpu_custom_call.1} parent=1 // pred_check
      _
    $region15: #{tpu_custom_call.1} parent=1 // pred_check_branch
      %24 = sbr.rel (0) target = $region17
    $region16: #{tpu_custom_call.1} parent=1 // pred_region
      _
    $region17: #{tpu_custom_call.1} parent=1 // pred_fallthru
      _
    // Predicated region
    $region18: #{tpu_custom_call.1} parent=1 // pred_check
      _
    $region19: #{tpu_custom_call.1} parent=1 // pred_check_branch
      %26 = sbr.rel (0) target = $region21
    $region20: #{tpu_custom_call.1} parent=1 // pred_region
      %s28 = ssub.s32 1024, 1024
      %29 = vsyncadd [#allocation5], %s28
      %s30 = sshll.u32 [#allocation4], 4
      %s31 = int_to_ptr.vmem [resolvable:$true] %s30
      %36 = dma.hbm_to_vmem [thread:$0]  %s4, 1024, %s31, [#allocation5], 64, 64, 4
    $region21: #{tpu_custom_call.1} parent=1 // pred_fallthru
      _
    // Predicated region
    $region22: #{tpu_custom_call.1} parent=1 // pred_check
      _
    $region23: #{tpu_custom_call.1} parent=1 // pred_check_branch
      %38 = sbr.rel (0) target = $region25
    $region24: #{tpu_custom_call.1} parent=1 // pred_region
      %s40 = ssub.s32 1024, 1024
      %41 = vsyncadd [#allocation8], %s40
      %s42 = sshll.u32 [#allocation7], 4
      %s43 = int_to_ptr.vmem [resolvable:$true] %s42
      %48 = dma.hbm_to_vmem [thread:$0]  %s5, 1024, %s43, [#allocation8], 64, 64, 4
    $region25: #{tpu_custom_call.1} parent=1 // pred_fallthru
      _
    // Predicated region
    $region26: #{tpu_custom_call.1} parent=1 // pred_check
      _
    $region27: #{tpu_custom_call.1} parent=1 // pred_check_branch
      %50 = sbr.rel (0) target = $region29
    $region28: #{tpu_custom_call.1} parent=1 // pred_region
      _
    $region29: #{tpu_custom_call.1} parent=1 // pred_fallthru
      _
    // Predicated region
    $region30: #{tpu_custom_call.1} parent=1 // pred_check
      _
    $region31: #{tpu_custom_call.1} parent=1 // pred_check_branch
      %52 = sbr.rel (0) target = $region33
    $region32: #{tpu_custom_call.1} parent=1 // pred_region
      %s54 = ssub.s32 1024, 1024
      %55 = vsyncadd [#allocation8], %s54
      %s56 = sshll.u32 [#allocation9], 4
      %s57 = int_to_ptr.vmem [resolvable:$true] %s56
      %62 = dma.hbm_to_vmem [thread:$0]  %s7, 1024, %s57, [#allocation8], 64, 64, 4
    $region33: #{tpu_custom_call.1} parent=1 // pred_fallthru
      _
    // Predicated region
    $region34: #{tpu_custom_call.1} parent=1 // pred_check
      _
    $region35: #{tpu_custom_call.1} parent=1 // pred_check_branch
      %64 = sbr.rel (0) target = $region37
    $region36: #{tpu_custom_call.1} parent=1 // pred_region
      _
    $region37: #{tpu_custom_call.1} parent=1 // pred_fallthru
      _
    // Predicated region
    $region38: #{tpu_custom_call.1} parent=1 // pred_check
      _
    $region39: #{tpu_custom_call.1} parent=1 // pred_check_branch
      %66 = sbr.rel (0) target = $region41
    $region40: #{tpu_custom_call.1} parent=1 // pred_region
      %67 = dma.done [#allocation5], 1024
    $region41: #{tpu_custom_call.1} parent=1 // pred_fallthru
      _
    // Predicated region
    $region42: #{tpu_custom_call.1} parent=1 // pred_check
      _
    $region43: #{tpu_custom_call.1} parent=1 // pred_check_branch
      %69 = sbr.rel (0) target = $region45
    $region44: #{tpu_custom_call.1} parent=1 // pred_region
      %70 = dma.done [#allocation8], 1024
    $region45: #{tpu_custom_call.1} parent=1 // pred_fallthru
      _
    // Predicated region
    $region46: #{tpu_custom_call.1} parent=1 // pred_check
      _
    $region47: #{tpu_custom_call.1} parent=1 // pred_check_branch
      %72 = sbr.rel (0) target = $region49
    $region48: #{tpu_custom_call.1} parent=1 // pred_region
      %73 = dma.done [#allocation8], 1024
    $region49: #{tpu_custom_call.1} parent=1 // pred_fallthru
      _
    %v75 = vld [vmem:[%s0] sm:$0xf]
    %v76 = vld [vmem:[%s0 + $0x4] sm:$0xf]
    %v77 = vld [vmem:[%s0 + $0x8] sm:$0xf]
    %v78 = vld [vmem:[%s0 + $0xc] sm:$0xf]
    %v79 = vld [vmem:[%s0 + $0x10] sm:$0xf]
    %v80 = vld [vmem:[%s0 + $0x14] sm:$0xf]
    %v81 = vld [vmem:[%s0 + $0x18] sm:$0xf]
    %v82 = vld [vmem:[%s0 + $0x1c] sm:$0xf]
    %v83 = vld [vmem:[%s0 + $0x20] sm:$0xf]
    %v84 = vld [vmem:[%s0 + $0x24] sm:$0xf]
    %v85 = vld [vmem:[%s0 + $0x28] sm:$0xf]
    %v86 = vld [vmem:[%s0 + $0x2c] sm:$0xf]
    %v87 = vld [vmem:[%s0 + $0x30] sm:$0xf]
    %v88 = vld [vmem:[%s0 + $0x34] sm:$0xf]
    %v89 = vld [vmem:[%s0 + $0x38] sm:$0xf]
    %v90 = vld [vmem:[%s0 + $0x3c] sm:$0xf]
    %v91 = vld [vmem:[%s1] sm:$0xf]
    %v92 = vld [vmem:[%s1 + $0x4] sm:$0xf]
    %v93 = vld [vmem:[%s3] sm:$0x1]
    %v95 = vlaneseq
    %v96 = vshrl.u32 %v95, 7
    %v97 = vsub.s32 0, %v96
    %v98 = vrot.slane %v93, %v97
    %v116 = vunpack.c.l.b16 %v75
    %v117 = vunpack.c.l.b16 %v76
    %v118 = vunpack.c.l.b16 %v77
    %v119 = vunpack.c.l.b16 %v78
    %v120 = vunpack.c.l.b16 %v79
    %v121 = vunpack.c.l.b16 %v80
    %v122 = vunpack.c.l.b16 %v81
    %v123 = vunpack.c.l.b16 %v82
    %v124 = vunpack.c.l.b16 %v83
    %v125 = vunpack.c.l.b16 %v84
    %v126 = vunpack.c.l.b16 %v85
    %v127 = vunpack.c.l.b16 %v86
    %v128 = vunpack.c.l.b16 %v87
    %v129 = vunpack.c.l.b16 %v88
    %v130 = vunpack.c.l.b16 %v89
    %v131 = vunpack.c.l.b16 %v90
    %v132 = vpack.c.b16 %v117, %v116
    %v133 = vpack.c.b16 %v119, %v118
    %v134 = vpack.c.b16 %v121, %v120
    %v135 = vpack.c.b16 %v123, %v122
    %v136 = vpack.c.b16 %v125, %v124
    %v137 = vpack.c.b16 %v127, %v126
    %v138 = vpack.c.b16 %v129, %v128
    %v139 = vpack.c.b16 %v131, %v130
    %v142 = vunpack.c.l.b16 %v91
    %v143 = vunpack.c.l.b16 %v92
    %v144 = vpack.c.b16 %v143, %v142
    %vm146 = vcmask 130048
    %v148 = vsel %vm146, %v132, 0
    %v151 = vsel %vm146, %v133, 0
    %v154 = vsel %vm146, %v134, 0
    %v157 = vsel %vm146, %v135, 0
    %v160 = vsel %vm146, %v136, 0
    %v163 = vsel %vm146, %v137, 0
    %v166 = vsel %vm146, %v138, 0
    %v169 = vsel %vm146, %v139, 0
    %171 = vmatprep.subr.bf16.mxu0 0
    %172 = vmatpush1.bf16.msra.mxu0 %v144
    %173 = vmatprep.subr.bf16.mxu0 0
    %174 = vmatpush1.bf16.msra.mxu0 0
    %175 = vmatprep.subr.bf16.mxu0 0
    %176 = vmatpush1.bf16.msra.mxu0 0
    %177 = vmatprep.subr.bf16.mxu0 0
    %178 = vmatpush1.bf16.msra.mxu0 0
    %179 = vmatprep.subr.bf16.mxu0 0
    %180 = vmatpush1.bf16.msra.mxu0 0
    %181 = vmatprep.subr.bf16.mxu0 0
    %182 = vmatpush1.bf16.msra.mxu0 0
    %183 = vmatprep.subr.bf16.mxu0 0
    %184 = vmatpush1.bf16.msra.mxu0 0
    %185 = vmatprep.subr.bf16.mxu0 0
    %186 = vmatpush1.bf16.msra.mxu0 0
    %187 = vmatprep.subr.bf16.mxu0 0
    %188 = vmatpush1.bf16.msra.mxu0 0
    %189 = vmatprep.subr.bf16.mxu0 0
    %190 = vmatpush1.bf16.msra.mxu0 0
    %191 = vmatprep.subr.bf16.mxu0 0
    %192 = vmatpush1.bf16.msra.mxu0 0
    %193 = vmatprep.subr.bf16.mxu0 0
    %194 = vmatpush1.bf16.msra.mxu0 0
    %195 = vmatprep.subr.bf16.mxu0 0
    %196 = vmatpush1.bf16.msra.mxu0 0
    %197 = vmatprep.subr.bf16.mxu0 0
    %198 = vmatpush1.bf16.msra.mxu0 0
    %199 = vmatprep.subr.bf16.mxu0 0
    %200 = vmatpush1.bf16.msra.mxu0 0
    %201 = vmatprep.subr.bf16.mxu0 0
    %202 = vmatpush1.bf16.msra.mxu0 0
    %203 = vmatprep.mubr.bf16.mxu0 0
    %204 = vmatmul.mubr.bf16.gmra.mrb[0].mxu0 %v148
    %v205 = vpop.f32.mrb[0].mxu0
    %v206 = vadd.f32 %v98, %v205
    %v207 = vpop.f32.mrb[0].mxu0
    %v208 = vpop.f32.mrb[0].mxu0
    %v209 = vadd.f32 %v98, %v208
    %v210 = vpop.f32.mrb[0].mxu0
    %211 = vmatprep.mubr.bf16.mxu0 0
    %212 = vmatmul.mubr.bf16.gmra.mrb[0].mxu0 %v151
    %v213 = vpop.f32.mrb[0].mxu0
    %v214 = vadd.f32 %v98, %v213
    %v215 = vpop.f32.mrb[0].mxu0
    %v216 = vpop.f32.mrb[0].mxu0
    %v217 = vadd.f32 %v98, %v216
    %v218 = vpop.f32.mrb[0].mxu0
    %219 = vmatprep.mubr.bf16.mxu0 0
    %220 = vmatmul.mubr.bf16.gmra.mrb[0].mxu0 %v154
    %v221 = vpop.f32.mrb[0].mxu0
    %v222 = vadd.f32 %v98, %v221
    %v223 = vpop.f32.mrb[0].mxu0
    %v224 = vpop.f32.mrb[0].mxu0
    %v225 = vadd.f32 %v98, %v224
    %v226 = vpop.f32.mrb[0].mxu0
    %227 = vmatprep.mubr.bf16.mxu0 0
    %228 = vmatmul.mubr.bf16.gmra.mrb[0].mxu0 %v157
    %v229 = vpop.f32.mrb[0].mxu0
    %v230 = vadd.f32 %v98, %v229
    %v231 = vpop.f32.mrb[0].mxu0
    %v232 = vpop.f32.mrb[0].mxu0
    %v233 = vadd.f32 %v98, %v232
    %v234 = vpop.f32.mrb[0].mxu0
    %235 = vmatprep.mubr.bf16.mxu0 0
    %236 = vmatmul.mubr.bf16.gmra.mrb[0].mxu0 %v160
    %v237 = vpop.f32.mrb[0].mxu0
    %v238 = vadd.f32 %v98, %v237
    %v239 = vpop.f32.mrb[0].mxu0
    %v240 = vpop.f32.mrb[0].mxu0
    %v241 = vadd.f32 %v98, %v240
    %v242 = vpop.f32.mrb[0].mxu0
    %243 = vmatprep.mubr.bf16.mxu0 0
    %244 = vmatmul.mubr.bf16.gmra.mrb[0].mxu0 %v163
    %v245 = vpop.f32.mrb[0].mxu0
    %v246 = vadd.f32 %v98, %v245
    %v247 = vpop.f32.mrb[0].mxu0
    %v248 = vpop.f32.mrb[0].mxu0
    %v249 = vadd.f32 %v98, %v248
    %v250 = vpop.f32.mrb[0].mxu0
    %251 = vmatprep.mubr.bf16.mxu0 0
    %252 = vmatmul.mubr.bf16.gmra.mrb[0].mxu0 %v166
    %v253 = vpop.f32.mrb[0].mxu0
    %v254 = vadd.f32 %v98, %v253
    %v255 = vpop.f32.mrb[0].mxu0
    %v256 = vpop.f32.mrb[0].mxu0
    %v257 = vadd.f32 %v98, %v256
    %v258 = vpop.f32.mrb[0].mxu0
    %259 = vmatprep.mubr.bf16.mxu0 0
    %260 = vmatmul.mubr.bf16.gmra.mrb[0].mxu0 %v169
    %v261 = vpop.f32.mrb[0].mxu0
    %v262 = vadd.f32 %v98, %v261
    %v263 = vpop.f32.mrb[0].mxu0
    %v264 = vpop.f32.mrb[0].mxu0
    %v265 = vadd.f32 %v98, %v264
    %v266 = vpop.f32.mrb[0].mxu0
    %267 = vdwg.mxu0
    %268 = vst [vmem:[#allocation2] sm:$0xff] %v206
    %269 = vst [vmem:[#allocation2 + $0x8] sm:$0xff] %v209
    %270 = vst [vmem:[#allocation2 + $0x10] sm:$0xff] %v214
    %271 = vst [vmem:[#allocation2 + $0x18] sm:$0xff] %v217
    %272 = vst [vmem:[#allocation2 + $0x20] sm:$0xff] %v222
    %273 = vst [vmem:[#allocation2 + $0x28] sm:$0xff] %v225
    %274 = vst [vmem:[#allocation2 + $0x30] sm:$0xff] %v230
    %275 = vst [vmem:[#allocation2 + $0x38] sm:$0xff] %v233
    %276 = vst [vmem:[#allocation2 + $0x40] sm:$0xff] %v238
    %277 = vst [vmem:[#allocation2 + $0x48] sm:$0xff] %v241
    %278 = vst [vmem:[#allocation2 + $0x50] sm:$0xff] %v246
    %279 = vst [vmem:[#allocation2 + $0x58] sm:$0xff] %v249
    %280 = vst [vmem:[#allocation2 + $0x60] sm:$0xff] %v254
    %281 = vst [vmem:[#allocation2 + $0x68] sm:$0xff] %v257
    %282 = vst [vmem:[#allocation2 + $0x70] sm:$0xff] %v262
    %283 = vst [vmem:[#allocation2 + $0x78] sm:$0xff] %v265
    %v284 = vld [vmem:[%s2] sm:$0xf]
    %v285 = vld [vmem:[%s2 + $0x4] sm:$0xf]
    %v286 = vld [vmem:[%s2 + $0x8] sm:$0xf]
    %v287 = vld [vmem:[%s2 + $0xc] sm:$0xf]
    %v288 = vld [vmem:[%s2 + $0x10] sm:$0xf]
    %v289 = vld [vmem:[%s2 + $0x14] sm:$0xf]
    %v290 = vld [vmem:[%s2 + $0x18] sm:$0xf]
    %v291 = vld [vmem:[%s2 + $0x1c] sm:$0xf]
    %v292 = vld [vmem:[%s2 + $0x20] sm:$0xf]
    %v293 = vld [vmem:[%s2 + $0x24] sm:$0xf]
    %v294 = vld [vmem:[%s2 + $0x28] sm:$0xf]
    %v295 = vld [vmem:[%s2 + $0x2c] sm:$0xf]
    %v296 = vld [vmem:[%s2 + $0x30] sm:$0xf]
    %v297 = vld [vmem:[%s2 + $0x34] sm:$0xf]
    %v298 = vld [vmem:[%s2 + $0x38] sm:$0xf]
    %v299 = vld [vmem:[%s2 + $0x3c] sm:$0xf]
    %v300 = vld [vmem:[#allocation2] sm:$0xff]
    %v301 = vld [vmem:[#allocation2 + $0x8] sm:$0xff]
    %v318 = vunpack.c.l.b16 %v284
    %v319 = vunpack.c.l.b16 %v285
    %v320 = vunpack.c.l.b16 %v286
    %v321 = vunpack.c.l.b16 %v287
    %v322 = vunpack.c.l.b16 %v288
    %v323 = vunpack.c.l.b16 %v289
    %v324 = vunpack.c.l.b16 %v290
    %v325 = vunpack.c.l.b16 %v291
    %v326 = vunpack.c.l.b16 %v292
    %v327 = vunpack.c.l.b16 %v293
    %v328 = vunpack.c.l.b16 %v294
    %v329 = vunpack.c.l.b16 %v295
    %v330 = vunpack.c.l.b16 %v296
    %v331 = vunpack.c.l.b16 %v297
    %v332 = vunpack.c.l.b16 %v298
    %v333 = vunpack.c.l.b16 %v299
    %v334 = vpack.c.b16 %v319, %v318
    %v335 = vpack.c.b16 %v321, %v320
    %v336 = vpack.c.b16 %v323, %v322
    %v337 = vpack.c.b16 %v325, %v324
    %v338 = vpack.c.b16 %v327, %v326
    %v339 = vpack.c.b16 %v329, %v328
    %v340 = vpack.c.b16 %v331, %v330
    %v341 = vpack.c.b16 %v333, %v332
    %350 = vmatprep.subr.bf16.mxu0 0
    %351 = vmatpush1.bf16.msra.mxu0 %v334
    %352 = vmatprep.subr.bf16.mxu0 0
    %353 = vmatpush1.bf16.msra.mxu0 %v335
    %354 = vmatprep.subr.bf16.mxu0 0
    %355 = vmatpush1.bf16.msra.mxu0 %v336
    %356 = vmatprep.subr.bf16.mxu0 0
    %357 = vmatpush1.bf16.msra.mxu0 %v337
    %358 = vmatprep.subr.bf16.mxu0 0
    %359 = vmatpush1.bf16.msra.mxu0 %v338
    %360 = vmatprep.subr.bf16.mxu0 0
    %361 = vmatpush1.bf16.msra.mxu0 %v339
    %362 = vmatprep.subr.bf16.mxu0 0
    %363 = vmatpush1.bf16.msra.mxu0 %v340
    %364 = vmatprep.subr.bf16.mxu0 0
    %365 = vmatpush1.bf16.msra.mxu0 %v341
    %366 = vmatprep.subr.bf16.mxu0 0
    %367 = vmatpush1.bf16.msra.mxu0 0
    %368 = vmatprep.subr.bf16.mxu0 0
    %369 = vmatpush1.bf16.msra.mxu0 0
    %370 = vmatprep.subr.bf16.mxu0 0
    %371 = vmatpush1.bf16.msra.mxu0 0
    %372 = vmatprep.subr.bf16.mxu0 0
    %373 = vmatpush1.bf16.msra.mxu0 0
    %374 = vmatprep.subr.bf16.mxu0 0
    %375 = vmatpush1.bf16.msra.mxu0 0
    %376 = vmatprep.subr.bf16.mxu0 0
    %377 = vmatpush1.bf16.msra.mxu0 0
    %378 = vmatprep.subr.bf16.mxu0 0
    %379 = vmatpush1.bf16.msra.mxu0 0
    %380 = vmatprep.subr.bf16.mxu0 0
    %381 = vmatpush1.bf16.msra.mxu0 0
    %382 = vmatprep.mubr.bf16.mxu0 0
    %383 = vmatmul.mubr.bf16.gmra.mrb[0].mxu0 0
    %v384 = vpop.f32.mrb[0].mxu0
    %v385 = vadd.f32 %v300, %v384
    %v386 = vpop.f32.mrb[0].mxu0
    %v387 = vpop.f32.mrb[0].mxu0
    %v388 = vadd.f32 %v301, %v387
    %v389 = vpop.f32.mrb[0].mxu0
    %390 = vdwg.mxu0
    %v391 = vtanh.pop %v385
    %v392 = vtanh.pop %v388
    %v393 = vpack.c.bf16 %v392, %v391
    %394 = vst [vmem:[#allocation3] sm:$0xff] %v393
    %s395 = scalar_lea.vmem [#allocation2], 16
    %v396 = vld [vmem:[%s395] sm:$0xff]
    %v397 = vld [vmem:[%s395 + $0x8] sm:$0xff]
    %398 = vmatprep.subr.bf16.mxu0 0
    %399 = vmatpush1.bf16.msra.mxu0 %v334
    %400 = vmatprep.subr.bf16.mxu0 0
    %401 = vmatpush1.bf16.msra.mxu0 %v335
    %402 = vmatprep.subr.bf16.mxu0 0
    %403 = vmatpush1.bf16.msra.mxu0 %v336
    %404 = vmatprep.subr.bf16.mxu0 0
    %405 = vmatpush1.bf16.msra.mxu0 %v337
    %406 = vmatprep.subr.bf16.mxu0 0
    %407 = vmatpush1.bf16.msra.mxu0 %v338
    %408 = vmatprep.subr.bf16.mxu0 0
    %409 = vmatpush1.bf16.msra.mxu0 %v339
    %410 = vmatprep.subr.bf16.mxu0 0
    %411 = vmatpush1.bf16.msra.mxu0 %v340
    %412 = vmatprep.subr.bf16.mxu0 0
    %413 = vmatpush1.bf16.msra.mxu0 %v341
    %414 = vmatprep.subr.bf16.mxu0 0
    %415 = vmatpush1.bf16.msra.mxu0 0
    %416 = vmatprep.subr.bf16.mxu0 0
    %417 = vmatpush1.bf16.msra.mxu0 0
    %418 = vmatprep.subr.bf16.mxu0 0
    %419 = vmatpush1.bf16.msra.mxu0 0
    %420 = vmatprep.subr.bf16.mxu0 0
    %421 = vmatpush1.bf16.msra.mxu0 0
    %422 = vmatprep.subr.bf16.mxu0 0
    %423 = vmatpush1.bf16.msra.mxu0 0
    %424 = vmatprep.subr.bf16.mxu0 0
    %425 = vmatpush1.bf16.msra.mxu0 0
    %426 = vmatprep.subr.bf16.mxu0 0
    %427 = vmatpush1.bf16.msra.mxu0 0
    %428 = vmatprep.subr.bf16.mxu0 0
    %429 = vmatpush1.bf16.msra.mxu0 0
    %430 = vmatprep.mubr.bf16.mxu0 0
    %431 = vmatmul.mubr.bf16.gmra.mrb[0].mxu0 %v393
    %v432 = vpop.f32.mrb[0].mxu0
    %v433 = vadd.f32 %v396, %v432
    %v434 = vpop.f32.mrb[0].mxu0
    %v435 = vpop.f32.mrb[0].mxu0
    %v436 = vadd.f32 %v397, %v435
    %v437 = vpop.f32.mrb[0].mxu0
    %438 = vdwg.mxu0
    %v439 = vtanh.pop %v433
    %v440 = vtanh.pop %v436
    %v441 = vpack.c.bf16 %v440, %v439
    %s442 = scalar_lea.vmem [#allocation3], 8
    %443 = vst [vmem:[%s442] sm:$0xff] %v441
    %s444 = scalar_lea.vmem [#allocation2], 32
    %v445 = vld [vmem:[%s444] sm:$0xff]
    %v446 = vld [vmem:[%s444 + $0x8] sm:$0xff]
    %447 = vmatprep.subr.bf16.mxu0 0
    %448 = vmatpush1.bf16.msra.mxu0 %v334
    %449 = vmatprep.subr.bf16.mxu0 0
    %450 = vmatpush1.bf16.msra.mxu0 %v335
    %451 = vmatprep.subr.bf16.mxu0 0
    %452 = vmatpush1.bf16.msra.mxu0 %v336
    %453 = vmatprep.subr.bf16.mxu0 0
    %454 = vmatpush1.bf16.msra.mxu0 %v337
    %455 = vmatprep.subr.bf16.mxu0 0
    %456 = vmatpush1.bf16.msra.mxu0 %v338
    %457 = vmatprep.subr.bf16.mxu0 0
    %458 = vmatpush1.bf16.msra.mxu0 %v339
    %459 = vmatprep.subr.bf16.mxu0 0
    %460 = vmatpush1.bf16.msra.mxu0 %v340
    %461 = vmatprep.subr.bf16.mxu0 0
    %462 = vmatpush1.bf16.msra.mxu0 %v341
    %463 = vmatprep.subr.bf16.mxu0 0
    %464 = vmatpush1.bf16.msra.mxu0 0
    %465 = vmatprep.subr.bf16.mxu0 0
    %466 = vmatpush1.bf16.msra.mxu0 0
    %467 = vmatprep.subr.bf16.mxu0 0
    %468 = vmatpush1.bf16.msra.mxu0 0
    %469 = vmatprep.subr.bf16.mxu0 0
    %470 = vmatpush1.bf16.msra.mxu0 0
    %471 = vmatprep.subr.bf16.mxu0 0
    %472 = vmatpush1.bf16.msra.mxu0 0
    %473 = vmatprep.subr.bf16.mxu0 0
    %474 = vmatpush1.bf16.msra.mxu0 0
    %475 = vmatprep.subr.bf16.mxu0 0
    %476 = vmatpush1.bf16.msra.mxu0 0
    %477 = vmatprep.subr.bf16.mxu0 0
    %478 = vmatpush1.bf16.msra.mxu0 0
    %479 = vmatprep.mubr.bf16.mxu0 0
    %480 = vmatmul.mubr.bf16.gmra.mrb[0].mxu0 %v441
    %v481 = vpop.f32.mrb[0].mxu0
    %v482 = vadd.f32 %v445, %v481
    %v483 = vpop.f32.mrb[0].mxu0
    %v484 = vpop.f32.mrb[0].mxu0
    %v485 = vadd.f32 %v446, %v484
    %v486 = vpop.f32.mrb[0].mxu0
    %487 = vdwg.mxu0
    %v488 = vtanh.pop %v482
    %v489 = vtanh.pop %v485
    %v490 = vpack.c.bf16 %v489, %v488
    %s491 = scalar_lea.vmem [#allocation3], 16
    %492 = vst [vmem:[%s491] sm:$0xff] %v490
    %s493 = scalar_lea.vmem [#allocation2], 48
    %v494 = vld [vmem:[%s493] sm:$0xff]
    %v495 = vld [vmem:[%s493 + $0x8] sm:$0xff]
    %496 = vmatprep.subr.bf16.mxu0 0
    %497 = vmatpush1.bf16.msra.mxu0 %v334
    %498 = vmatprep.subr.bf16.mxu0 0
    %499 = vmatpush1.bf16.msra.mxu0 %v335
    %500 = vmatprep.subr.bf16.mxu0 0
    %501 = vmatpush1.bf16.msra.mxu0 %v336
    %502 = vmatprep.subr.bf16.mxu0 0
    %503 = vmatpush1.bf16.msra.mxu0 %v337
    %504 = vmatprep.subr.bf16.mxu0 0
    %505 = vmatpush1.bf16.msra.mxu0 %v338
    %506 = vmatprep.subr.bf16.mxu0 0
    %507 = vmatpush1.bf16.msra.mxu0 %v339
    %508 = vmatprep.subr.bf16.mxu0 0
    %509 = vmatpush1.bf16.msra.mxu0 %v340
    %510 = vmatprep.subr.bf16.mxu0 0
    %511 = vmatpush1.bf16.msra.mxu0 %v341
    %512 = vmatprep.subr.bf16.mxu0 0
    %513 = vmatpush1.bf16.msra.mxu0 0
    %514 = vmatprep.subr.bf16.mxu0 0
    %515 = vmatpush1.bf16.msra.mxu0 0
    %516 = vmatprep.subr.bf16.mxu0 0
    %517 = vmatpush1.bf16.msra.mxu0 0
    %518 = vmatprep.subr.bf16.mxu0 0
    %519 = vmatpush1.bf16.msra.mxu0 0
    %520 = vmatprep.subr.bf16.mxu0 0
    %521 = vmatpush1.bf16.msra.mxu0 0
    %522 = vmatprep.subr.bf16.mxu0 0
    %523 = vmatpush1.bf16.msra.mxu0 0
    %524 = vmatprep.subr.bf16.mxu0 0
    %525 = vmatpush1.bf16.msra.mxu0 0
    %526 = vmatprep.subr.bf16.mxu0 0
    %527 = vmatpush1.bf16.msra.mxu0 0
    %528 = vmatprep.mubr.bf16.mxu0 0
    %529 = vmatmul.mubr.bf16.gmra.mrb[0].mxu0 %v490
    %v530 = vpop.f32.mrb[0].mxu0
    %v531 = vadd.f32 %v494, %v530
    %v532 = vpop.f32.mrb[0].mxu0
    %v533 = vpop.f32.mrb[0].mxu0
    %v534 = vadd.f32 %v495, %v533
    %v535 = vpop.f32.mrb[0].mxu0
    %536 = vdwg.mxu0
    %v537 = vtanh.pop %v531
    %v538 = vtanh.pop %v534
    %v539 = vpack.c.bf16 %v538, %v537
    %s540 = scalar_lea.vmem [#allocation3], 24
    %541 = vst [vmem:[%s540] sm:$0xff] %v539
    %s542 = scalar_lea.vmem [#allocation2], 64
    %v543 = vld [vmem:[%s542] sm:$0xff]
    %v544 = vld [vmem:[%s542 + $0x8] sm:$0xff]
    %545 = vmatprep.subr.bf16.mxu0 0
    %546 = vmatpush1.bf16.msra.mxu0 %v334
    %547 = vmatprep.subr.bf16.mxu0 0
    %548 = vmatpush1.bf16.msra.mxu0 %v335
    %549 = vmatprep.subr.bf16.mxu0 0
    %550 = vmatpush1.bf16.msra.mxu0 %v336
    %551 = vmatprep.subr.bf16.mxu0 0
    %552 = vmatpush1.bf16.msra.mxu0 %v337
    %553 = vmatprep.subr.bf16.mxu0 0
    %554 = vmatpush1.bf16.msra.mxu0 %v338
    %555 = vmatprep.subr.bf16.mxu0 0
    %556 = vmatpush1.bf16.msra.mxu0 %v339
    %557 = vmatprep.subr.bf16.mxu0 0
    %558 = vmatpush1.bf16.msra.mxu0 %v340
    %559 = vmatprep.subr.bf16.mxu0 0
    %560 = vmatpush1.bf16.msra.mxu0 %v341
    %561 = vmatprep.subr.bf16.mxu0 0
    %562 = vmatpush1.bf16.msra.mxu0 0
    %563 = vmatprep.subr.bf16.mxu0 0
    %564 = vmatpush1.bf16.msra.mxu0 0
    %565 = vmatprep.subr.bf16.mxu0 0
    %566 = vmatpush1.bf16.msra.mxu0 0
    %567 = vmatprep.subr.bf16.mxu0 0
    %568 = vmatpush1.bf16.msra.mxu0 0
    %569 = vmatprep.subr.bf16.mxu0 0
    %570 = vmatpush1.bf16.msra.mxu0 0
    %571 = vmatprep.subr.bf16.mxu0 0
    %572 = vmatpush1.bf16.msra.mxu0 0
    %573 = vmatprep.subr.bf16.mxu0 0
    %574 = vmatpush1.bf16.msra.mxu0 0
    %575 = vmatprep.subr.bf16.mxu0 0
    %576 = vmatpush1.bf16.msra.mxu0 0
    %577 = vmatprep.mubr.bf16.mxu0 0
    %578 = vmatmul.mubr.bf16.gmra.mrb[0].mxu0 %v539
    %v579 = vpop.f32.mrb[0].mxu0
    %v580 = vadd.f32 %v543, %v579
    %v581 = vpop.f32.mrb[0].mxu0
    %v582 = vpop.f32.mrb[0].mxu0
    %v583 = vadd.f32 %v544, %v582
    %v584 = vpop.f32.mrb[0].mxu0
    %585 = vdwg.mxu0
    %v586 = vtanh.pop %v580
    %v587 = vtanh.pop %v583
    %v588 = vpack.c.bf16 %v587, %v586
    %s589 = scalar_lea.vmem [#allocation3], 32
    %590 = vst [vmem:[%s589] sm:$0xff] %v588
    %s591 = scalar_lea.vmem [#allocation2], 80
    %v592 = vld [vmem:[%s591] sm:$0xff]
    %v593 = vld [vmem:[%s591 + $0x8] sm:$0xff]
    %594 = vmatprep.subr.bf16.mxu0 0
    %595 = vmatpush1.bf16.msra.mxu0 %v334
    %596 = vmatprep.subr.bf16.mxu0 0
    %597 = vmatpush1.bf16.msra.mxu0 %v335
    %598 = vmatprep.subr.bf16.mxu0 0
    %599 = vmatpush1.bf16.msra.mxu0 %v336
    %600 = vmatprep.subr.bf16.mxu0 0
    %601 = vmatpush1.bf16.msra.mxu0 %v337
    %602 = vmatprep.subr.bf16.mxu0 0
    %603 = vmatpush1.bf16.msra.mxu0 %v338
    %604 = vmatprep.subr.bf16.mxu0 0
    %605 = vmatpush1.bf16.msra.mxu0 %v339
    %606 = vmatprep.subr.bf16.mxu0 0
    %607 = vmatpush1.bf16.msra.mxu0 %v340
    %608 = vmatprep.subr.bf16.mxu0 0
    %609 = vmatpush1.bf16.msra.mxu0 %v341
    %610 = vmatprep.subr.bf16.mxu0 0
    %611 = vmatpush1.bf16.msra.mxu0 0
    %612 = vmatprep.subr.bf16.mxu0 0
    %613 = vmatpush1.bf16.msra.mxu0 0
    %614 = vmatprep.subr.bf16.mxu0 0
    %615 = vmatpush1.bf16.msra.mxu0 0
    %616 = vmatprep.subr.bf16.mxu0 0
    %617 = vmatpush1.bf16.msra.mxu0 0
    %618 = vmatprep.subr.bf16.mxu0 0
    %619 = vmatpush1.bf16.msra.mxu0 0
    %620 = vmatprep.subr.bf16.mxu0 0
    %621 = vmatpush1.bf16.msra.mxu0 0
    %622 = vmatprep.subr.bf16.mxu0 0
    %623 = vmatpush1.bf16.msra.mxu0 0
    %624 = vmatprep.subr.bf16.mxu0 0
    %625 = vmatpush1.bf16.msra.mxu0 0
    %626 = vmatprep.mubr.bf16.mxu0 0
    %627 = vmatmul.mubr.bf16.gmra.mrb[0].mxu0 %v588
    %v628 = vpop.f32.mrb[0].mxu0
    %v629 = vadd.f32 %v592, %v628
    %v630 = vpop.f32.mrb[0].mxu0
    %v631 = vpop.f32.mrb[0].mxu0
    %v632 = vadd.f32 %v593, %v631
    %v633 = vpop.f32.mrb[0].mxu0
    %634 = vdwg.mxu0
    %v635 = vtanh.pop %v629
    %v636 = vtanh.pop %v632
    %v637 = vpack.c.bf16 %v636, %v635
    %s638 = scalar_lea.vmem [#allocation3], 40
    %639 = vst [vmem:[%s638] sm:$0xff] %v637
    %s640 = scalar_lea.vmem [#allocation2], 96
    %v641 = vld [vmem:[%s640] sm:$0xff]
    %v642 = vld [vmem:[%s640 + $0x8] sm:$0xff]
    %643 = vmatprep.subr.bf16.mxu0 0
    %644 = vmatpush1.bf16.msra.mxu0 %v334
    %645 = vmatprep.subr.bf16.mxu0 0
    %646 = vmatpush1.bf16.msra.mxu0 %v335
    %647 = vmatprep.subr.bf16.mxu0 0
    %648 = vmatpush1.bf16.msra.mxu0 %v336
    %649 = vmatprep.subr.bf16.mxu0 0
    %650 = vmatpush1.bf16.msra.mxu0 %v337
    %651 = vmatprep.subr.bf16.mxu0 0
    %652 = vmatpush1.bf16.msra.mxu0 %v338
    %653 = vmatprep.subr.bf16.mxu0 0
    %654 = vmatpush1.bf16.msra.mxu0 %v339
    %655 = vmatprep.subr.bf16.mxu0 0
    %656 = vmatpush1.bf16.msra.mxu0 %v340
    %657 = vmatprep.subr.bf16.mxu0 0
    %658 = vmatpush1.bf16.msra.mxu0 %v341
    %659 = vmatprep.subr.bf16.mxu0 0
    %660 = vmatpush1.bf16.msra.mxu0 0
    %661 = vmatprep.subr.bf16.mxu0 0
    %662 = vmatpush1.bf16.msra.mxu0 0
    %663 = vmatprep.subr.bf16.mxu0 0
    %664 = vmatpush1.bf16.msra.mxu0 0
    %665 = vmatprep.subr.bf16.mxu0 0
    %666 = vmatpush1.bf16.msra.mxu0 0
    %667 = vmatprep.subr.bf16.mxu0 0
    %668 = vmatpush1.bf16.msra.mxu0 0
    %669 = vmatprep.subr.bf16.mxu0 0
    %670 = vmatpush1.bf16.msra.mxu0 0
    %671 = vmatprep.subr.bf16.mxu0 0
    %672 = vmatpush1.bf16.msra.mxu0 0
    %673 = vmatprep.subr.bf16.mxu0 0
    %674 = vmatpush1.bf16.msra.mxu0 0
    %675 = vmatprep.mubr.bf16.mxu0 0
    %676 = vmatmul.mubr.bf16.gmra.mrb[0].mxu0 %v637
    %v677 = vpop.f32.mrb[0].mxu0
    %v678 = vadd.f32 %v641, %v677
    %v679 = vpop.f32.mrb[0].mxu0
    %v680 = vpop.f32.mrb[0].mxu0
    %v681 = vadd.f32 %v642, %v680
    %v682 = vpop.f32.mrb[0].mxu0
    %683 = vdwg.mxu0
    %v684 = vtanh.pop %v678
    %v685 = vtanh.pop %v681
    %v686 = vpack.c.bf16 %v685, %v684
    %s687 = scalar_lea.vmem [#allocation3], 48
    %688 = vst [vmem:[%s687] sm:$0xff] %v686
    %s689 = scalar_lea.vmem [#allocation2], 112
    %v690 = vld [vmem:[%s689] sm:$0xff]
    %v691 = vld [vmem:[%s689 + $0x8] sm:$0xff]
    %692 = vmatprep.subr.bf16.mxu0 0
    %693 = vmatpush1.bf16.msra.mxu0 %v334
    %694 = vmatprep.subr.bf16.mxu0 0
    %695 = vmatpush1.bf16.msra.mxu0 %v335
    %696 = vmatprep.subr.bf16.mxu0 0
    %697 = vmatpush1.bf16.msra.mxu0 %v336
    %698 = vmatprep.subr.bf16.mxu0 0
    %699 = vmatpush1.bf16.msra.mxu0 %v337
    %700 = vmatprep.subr.bf16.mxu0 0
    %701 = vmatpush1.bf16.msra.mxu0 %v338
    %702 = vmatprep.subr.bf16.mxu0 0
    %703 = vmatpush1.bf16.msra.mxu0 %v339
    %704 = vmatprep.subr.bf16.mxu0 0
    %705 = vmatpush1.bf16.msra.mxu0 %v340
    %706 = vmatprep.subr.bf16.mxu0 0
    %707 = vmatpush1.bf16.msra.mxu0 %v341
    %708 = vmatprep.subr.bf16.mxu0 0
    %709 = vmatpush1.bf16.msra.mxu0 0
    %710 = vmatprep.subr.bf16.mxu0 0
    %711 = vmatpush1.bf16.msra.mxu0 0
    %712 = vmatprep.subr.bf16.mxu0 0
    %713 = vmatpush1.bf16.msra.mxu0 0
    %714 = vmatprep.subr.bf16.mxu0 0
    %715 = vmatpush1.bf16.msra.mxu0 0
    %716 = vmatprep.subr.bf16.mxu0 0
    %717 = vmatpush1.bf16.msra.mxu0 0
    %718 = vmatprep.subr.bf16.mxu0 0
    %719 = vmatpush1.bf16.msra.mxu0 0
    %720 = vmatprep.subr.bf16.mxu0 0
    %721 = vmatpush1.bf16.msra.mxu0 0
    %722 = vmatprep.subr.bf16.mxu0 0
    %723 = vmatpush1.bf16.msra.mxu0 0
    %724 = vmatprep.mubr.bf16.mxu0 0
    %725 = vmatmul.mubr.bf16.gmra.mrb[0].mxu0 %v686
    %v726 = vpop.f32.mrb[0].mxu0
    %v727 = vadd.f32 %v690, %v726
    %v728 = vpop.f32.mrb[0].mxu0
    %v729 = vpop.f32.mrb[0].mxu0
    %v730 = vadd.f32 %v691, %v729
    %v731 = vpop.f32.mrb[0].mxu0
    %732 = vdwg.mxu0
    %v733 = vtanh.pop %v727
    %v734 = vtanh.pop %v730
    %v735 = vpack.c.bf16 %v734, %v733
    %s736 = scalar_lea.vmem [#allocation3], 56
    %737 = vst [vmem:[%s736] sm:$0xff] %v735
    %v738 = vld [vmem:[#allocation3] sm:$0xff]
    %v739 = vld [vmem:[#allocation3 + $0x8] sm:$0xff]
    %v740 = vld [vmem:[#allocation3 + $0x10] sm:$0xff]
    %v741 = vld [vmem:[#allocation3 + $0x18] sm:$0xff]
    %v742 = vld [vmem:[#allocation3 + $0x20] sm:$0xff]
    %v743 = vld [vmem:[#allocation3 + $0x28] sm:$0xff]
    %v744 = vld [vmem:[#allocation3 + $0x30] sm:$0xff]
    %v745 = vld [vmem:[#allocation3 + $0x38] sm:$0xff]
    %v746 = vld [vmem:[#allocation4] sm:$0xf]
    %v747 = vld [vmem:[#allocation4 + $0x4] sm:$0xf]
    %v748 = vld [vmem:[#allocation4 + $0x8] sm:$0xf]
    %v749 = vld [vmem:[#allocation4 + $0xc] sm:$0xf]
    %v750 = vld [vmem:[#allocation4 + $0x10] sm:$0xf]
    %v751 = vld [vmem:[#allocation4 + $0x14] sm:$0xf]
    %v752 = vld [vmem:[#allocation4 + $0x18] sm:$0xf]
    %v753 = vld [vmem:[#allocation4 + $0x1c] sm:$0xf]
    %v754 = vld [vmem:[#allocation4 + $0x20] sm:$0xf]
    %v755 = vld [vmem:[#allocation4 + $0x24] sm:$0xf]
    %v756 = vld [vmem:[#allocation4 + $0x28] sm:$0xf]
    %v757 = vld [vmem:[#allocation4 + $0x2c] sm:$0xf]
    %v758 = vld [vmem:[#allocation4 + $0x30] sm:$0xf]
    %v759 = vld [vmem:[#allocation4 + $0x34] sm:$0xf]
    %v760 = vld [vmem:[#allocation4 + $0x38] sm:$0xf]
    %v761 = vld [vmem:[#allocation4 + $0x3c] sm:$0xf]
    %v762 = vld [vmem:[%s6] sm:$0x1]
    %v764 = vlaneseq
    %v765 = vshrl.u32 %v764, 7
    %v766 = vsub.s32 0, %v765
    %v767 = vrot.slane %v762, %v766
    %v785 = vunpack.c.l.b16 %v746
    %v786 = vunpack.c.l.b16 %v747
    %v787 = vunpack.c.l.b16 %v748
    %v788 = vunpack.c.l.b16 %v749
    %v789 = vunpack.c.l.b16 %v750
    %v790 = vunpack.c.l.b16 %v751
    %v791 = vunpack.c.l.b16 %v752
    %v792 = vunpack.c.l.b16 %v753
    %v793 = vunpack.c.l.b16 %v754
    %v794 = vunpack.c.l.b16 %v755
    %v795 = vunpack.c.l.b16 %v756
    %v796 = vunpack.c.l.b16 %v757
    %v797 = vunpack.c.l.b16 %v758
    %v798 = vunpack.c.l.b16 %v759
    %v799 = vunpack.c.l.b16 %v760
    %v800 = vunpack.c.l.b16 %v761
    %v801 = vpack.c.b16 %v786, %v785
    %v802 = vpack.c.b16 %v788, %v787
    %v803 = vpack.c.b16 %v790, %v789
    %v804 = vpack.c.b16 %v792, %v791
    %v805 = vpack.c.b16 %v794, %v793
    %v806 = vpack.c.b16 %v796, %v795
    %v807 = vpack.c.b16 %v798, %v797
    %v808 = vpack.c.b16 %v800, %v799
    %817 = vmatprep.subr.bf16.mxu0 0
    %818 = vmatpush1.bf16.msra.mxu0 %v801
    %819 = vmatprep.subr.bf16.mxu0 0
    %820 = vmatpush1.bf16.msra.mxu0 %v802
    %821 = vmatprep.subr.bf16.mxu0 0
    %822 = vmatpush1.bf16.msra.mxu0 %v803
    %823 = vmatprep.subr.bf16.mxu0 0
    %824 = vmatpush1.bf16.msra.mxu0 %v804
    %825 = vmatprep.subr.bf16.mxu0 0
    %826 = vmatpush1.bf16.msra.mxu0 %v805
    %827 = vmatprep.subr.bf16.mxu0 0
    %828 = vmatpush1.bf16.msra.mxu0 %v806
    %829 = vmatprep.subr.bf16.mxu0 0
    %830 = vmatpush1.bf16.msra.mxu0 %v807
    %831 = vmatprep.subr.bf16.mxu0 0
    %832 = vmatpush1.bf16.msra.mxu0 %v808
    %833 = vmatprep.subr.bf16.mxu0 0
    %834 = vmatpush1.bf16.msra.mxu0 0
    %835 = vmatprep.subr.bf16.mxu0 0
    %836 = vmatpush1.bf16.msra.mxu0 0
    %837 = vmatprep.subr.bf16.mxu0 0
    %838 = vmatpush1.bf16.msra.mxu0 0
    %839 = vmatprep.subr.bf16.mxu0 0
    %840 = vmatpush1.bf16.msra.mxu0 0
    %841 = vmatprep.subr.bf16.mxu0 0
    %842 = vmatpush1.bf16.msra.mxu0 0
    %843 = vmatprep.subr.bf16.mxu0 0
    %844 = vmatpush1.bf16.msra.mxu0 0
    %845 = vmatprep.subr.bf16.mxu0 0
    %846 = vmatpush1.bf16.msra.mxu0 0
    %847 = vmatprep.subr.bf16.mxu0 0
    %848 = vmatpush1.bf16.msra.mxu0 0
    %849 = vmatprep.mubr.bf16.mxu0 0
    %850 = vmatmul.mubr.bf16.gmra.mrb[0].mxu0 %v738
    %v851 = vpop.f32.mrb[0].mxu0
    %v852 = vadd.f32 %v767, %v851
    %v853 = vpop.f32.mrb[0].mxu0
    %v854 = vpop.f32.mrb[0].mxu0
    %v855 = vadd.f32 %v767, %v854
    %v856 = vpop.f32.mrb[0].mxu0
    %857 = vmatprep.mubr.bf16.mxu0 0
    %858 = vmatmul.mubr.bf16.gmra.mrb[0].mxu0 %v739
    %v859 = vpop.f32.mrb[0].mxu0
    %v860 = vadd.f32 %v767, %v859
    %v861 = vpop.f32.mrb[0].mxu0
    %v862 = vpop.f32.mrb[0].mxu0
    %v863 = vadd.f32 %v767, %v862
    %v864 = vpop.f32.mrb[0].mxu0
    %865 = vmatprep.mubr.bf16.mxu0 0
    %866 = vmatmul.mubr.bf16.gmra.mrb[0].mxu0 %v740
    %v867 = vpop.f32.mrb[0].mxu0
    %v868 = vadd.f32 %v767, %v867
    %v869 = vpop.f32.mrb[0].mxu0
    %v870 = vpop.f32.mrb[0].mxu0
    %v871 = vadd.f32 %v767, %v870
    %v872 = vpop.f32.mrb[0].mxu0
    %873 = vmatprep.mubr.bf16.mxu0 0
    %874 = vmatmul.mubr.bf16.gmra.mrb[0].mxu0 %v741
    %v875 = vpop.f32.mrb[0].mxu0
    %v876 = vadd.f32 %v767, %v875
    %v877 = vpop.f32.mrb[0].mxu0
    %v878 = vpop.f32.mrb[0].mxu0
    %v879 = vadd.f32 %v767, %v878
    %v880 = vpop.f32.mrb[0].mxu0
    %881 = vmatprep.mubr.bf16.mxu0 0
    %882 = vmatmul.mubr.bf16.gmra.mrb[0].mxu0 %v742
    %v883 = vpop.f32.mrb[0].mxu0
    %v884 = vadd.f32 %v767, %v883
    %v885 = vpop.f32.mrb[0].mxu0
    %v886 = vpop.f32.mrb[0].mxu0
    %v887 = vadd.f32 %v767, %v886
    %v888 = vpop.f32.mrb[0].mxu0
    %889 = vmatprep.mubr.bf16.mxu0 0
    %890 = vmatmul.mubr.bf16.gmra.mrb[0].mxu0 %v743
    %v891 = vpop.f32.mrb[0].mxu0
    %v892 = vadd.f32 %v767, %v891
    %v893 = vpop.f32.mrb[0].mxu0
    %v894 = vpop.f32.mrb[0].mxu0
    %v895 = vadd.f32 %v767, %v894
    %v896 = vpop.f32.mrb[0].mxu0
    %897 = vmatprep.mubr.bf16.mxu0 0
    %898 = vmatmul.mubr.bf16.gmra.mrb[0].mxu0 %v744
    %v899 = vpop.f32.mrb[0].mxu0
    %v900 = vadd.f32 %v767, %v899
    %v901 = vpop.f32.mrb[0].mxu0
    %v902 = vpop.f32.mrb[0].mxu0
    %v903 = vadd.f32 %v767, %v902
    %v904 = vpop.f32.mrb[0].mxu0
    %905 = vmatprep.mubr.bf16.mxu0 0
    %906 = vmatmul.mubr.bf16.gmra.mrb[0].mxu0 %v745
    %v907 = vpop.f32.mrb[0].mxu0
    %v908 = vadd.f32 %v767, %v907
    %v909 = vpop.f32.mrb[0].mxu0
    %v910 = vpop.f32.mrb[0].mxu0
    %v911 = vadd.f32 %v767, %v910
    %v912 = vpop.f32.mrb[0].mxu0
    %913 = vdwg.mxu0
    %914 = vst [vmem:[#allocation2] sm:$0xff] %v852
    %915 = vst [vmem:[#allocation2 + $0x8] sm:$0xff] %v855
    %916 = vst [vmem:[#allocation2 + $0x10] sm:$0xff] %v860
    %917 = vst [vmem:[#allocation2 + $0x18] sm:$0xff] %v863
    %918 = vst [vmem:[#allocation2 + $0x20] sm:$0xff] %v868
    %919 = vst [vmem:[#allocation2 + $0x28] sm:$0xff] %v871
    %920 = vst [vmem:[#allocation2 + $0x30] sm:$0xff] %v876
    %921 = vst [vmem:[#allocation2 + $0x38] sm:$0xff] %v879
    %922 = vst [vmem:[#allocation2 + $0x40] sm:$0xff] %v884
    %923 = vst [vmem:[#allocation2 + $0x48] sm:$0xff] %v887
    %924 = vst [vmem:[#allocation2 + $0x50] sm:$0xff] %v892
    %925 = vst [vmem:[#allocation2 + $0x58] sm:$0xff] %v895
    %926 = vst [vmem:[#allocation2 + $0x60] sm:$0xff] %v900
    %927 = vst [vmem:[#allocation2 + $0x68] sm:$0xff] %v903
    %928 = vst [vmem:[#allocation2 + $0x70] sm:$0xff] %v908
    %929 = vst [vmem:[#allocation2 + $0x78] sm:$0xff] %v911
    %v930 = vld [vmem:[#allocation7] sm:$0xf]
    %v931 = vld [vmem:[#allocation7 + $0x4] sm:$0xf]
    %v932 = vld [vmem:[#allocation7 + $0x8] sm:$0xf]
    %v933 = vld [vmem:[#allocation7 + $0xc] sm:$0xf]
    %v934 = vld [vmem:[#allocation7 + $0x10] sm:$0xf]
    %v935 = vld [vmem:[#allocation7 + $0x14] sm:$0xf]
    %v936 = vld [vmem:[#allocation7 + $0x18] sm:$0xf]
    %v937 = vld [vmem:[#allocation7 + $0x1c] sm:$0xf]
    %v938 = vld [vmem:[#allocation7 + $0x20] sm:$0xf]
    %v939 = vld [vmem:[#allocation7 + $0x24] sm:$0xf]
    %v940 = vld [vmem:[#allocation7 + $0x28] sm:$0xf]
    %v941 = vld [vmem:[#allocation7 + $0x2c] sm:$0xf]
    %v942 = vld [vmem:[#allocation7 + $0x30] sm:$0xf]
    %v943 = vld [vmem:[#allocation7 + $0x34] sm:$0xf]
    %v944 = vld [vmem:[#allocation7 + $0x38] sm:$0xf]
    %v945 = vld [vmem:[#allocation7 + $0x3c] sm:$0xf]
    %v946 = vld [vmem:[#allocation2] sm:$0xff]
    %v947 = vld [vmem:[#allocation2 + $0x8] sm:$0xff]
    %v964 = vunpack.c.l.b16 %v930
    %v965 = vunpack.c.l.b16 %v931
    %v966 = vunpack.c.l.b16 %v932
    %v967 = vunpack.c.l.b16 %v933
    %v968 = vunpack.c.l.b16 %v934
    %v969 = vunpack.c.l.b16 %v935
    %v970 = vunpack.c.l.b16 %v936
    %v971 = vunpack.c.l.b16 %v937
    %v972 = vunpack.c.l.b16 %v938
    %v973 = vunpack.c.l.b16 %v939
    %v974 = vunpack.c.l.b16 %v940
    %v975 = vunpack.c.l.b16 %v941
    %v976 = vunpack.c.l.b16 %v942
    %v977 = vunpack.c.l.b16 %v943
    %v978 = vunpack.c.l.b16 %v944
    %v979 = vunpack.c.l.b16 %v945
    %v980 = vpack.c.b16 %v965, %v964
    %v981 = vpack.c.b16 %v967, %v966
    %v982 = vpack.c.b16 %v969, %v968
    %v983 = vpack.c.b16 %v971, %v970
    %v984 = vpack.c.b16 %v973, %v972
    %v985 = vpack.c.b16 %v975, %v974
    %v986 = vpack.c.b16 %v977, %v976
    %v987 = vpack.c.b16 %v979, %v978
    %996 = vmatprep.subr.bf16.mxu0 0
    %997 = vmatpush1.bf16.msra.mxu0 %v980
    %998 = vmatprep.subr.bf16.mxu0 0
    %999 = vmatpush1.bf16.msra.mxu0 %v981
    %1000 = vmatprep.subr.bf16.mxu0 0
    %1001 = vmatpush1.bf16.msra.mxu0 %v982
    %1002 = vmatprep.subr.bf16.mxu0 0
    %1003 = vmatpush1.bf16.msra.mxu0 %v983
    %1004 = vmatprep.subr.bf16.mxu0 0
    %1005 = vmatpush1.bf16.msra.mxu0 %v984
    %1006 = vmatprep.subr.bf16.mxu0 0
    %1007 = vmatpush1.bf16.msra.mxu0 %v985
    %1008 = vmatprep.subr.bf16.mxu0 0
    %1009 = vmatpush1.bf16.msra.mxu0 %v986
    %1010 = vmatprep.subr.bf16.mxu0 0
    %1011 = vmatpush1.bf16.msra.mxu0 %v987
    %1012 = vmatprep.subr.bf16.mxu0 0
    %1013 = vmatpush1.bf16.msra.mxu0 0
    %1014 = vmatprep.subr.bf16.mxu0 0
    %1015 = vmatpush1.bf16.msra.mxu0 0
    %1016 = vmatprep.subr.bf16.mxu0 0
    %1017 = vmatpush1.bf16.msra.mxu0 0
    %1018 = vmatprep.subr.bf16.mxu0 0
    %1019 = vmatpush1.bf16.msra.mxu0 0
    %1020 = vmatprep.subr.bf16.mxu0 0
    %1021 = vmatpush1.bf16.msra.mxu0 0
    %1022 = vmatprep.subr.bf16.mxu0 0
    %1023 = vmatpush1.bf16.msra.mxu0 0
    %1024 = vmatprep.subr.bf16.mxu0 0
    %1025 = vmatpush1.bf16.msra.mxu0 0
    %1026 = vmatprep.subr.bf16.mxu0 0
    %1027 = vmatpush1.bf16.msra.mxu0 0
    %1028 = vmatprep.mubr.bf16.mxu0 0
    %1029 = vmatmul.mubr.bf16.gmra.mrb[0].mxu0 0
    %v1030 = vpop.f32.mrb[0].mxu0
    %v1031 = vadd.f32 %v946, %v1030
    %v1032 = vpop.f32.mrb[0].mxu0
    %v1033 = vpop.f32.mrb[0].mxu0
    %v1034 = vadd.f32 %v947, %v1033
    %v1035 = vpop.f32.mrb[0].mxu0
    %1036 = vdwg.mxu0
    %v1037 = vtanh.pop %v1031
    %v1038 = vtanh.pop %v1034
    %v1039 = vpack.c.bf16 %v1038, %v1037
    %v1040 = vld [vmem:[%s395] sm:$0xff]
    %v1041 = vld [vmem:[%s395 + $0x8] sm:$0xff]
    %1042 = vmatprep.subr.bf16.mxu0 0
    %1043 = vmatpush1.bf16.msra.mxu0 %v980
    %1044 = vmatprep.subr.bf16.mxu0 0
    %1045 = vmatpush1.bf16.msra.mxu0 %v981
    %1046 = vmatprep.subr.bf16.mxu0 0
    %1047 = vmatpush1.bf16.msra.mxu0 %v982
    %1048 = vmatprep.subr.bf16.mxu0 0
    %1049 = vmatpush1.bf16.msra.mxu0 %v983
    %1050 = vmatprep.subr.bf16.mxu0 0
    %1051 = vmatpush1.bf16.msra.mxu0 %v984
    %1052 = vmatprep.subr.bf16.mxu0 0
    %1053 = vmatpush1.bf16.msra.mxu0 %v985
    %1054 = vmatprep.subr.bf16.mxu0 0
    %1055 = vmatpush1.bf16.msra.mxu0 %v986
    %1056 = vmatprep.subr.bf16.mxu0 0
    %1057 = vmatpush1.bf16.msra.mxu0 %v987
    %1058 = vmatprep.subr.bf16.mxu0 0
    %1059 = vmatpush1.bf16.msra.mxu0 0
    %1060 = vmatprep.subr.bf16.mxu0 0
    %1061 = vmatpush1.bf16.msra.mxu0 0
    %1062 = vmatprep.subr.bf16.mxu0 0
    %1063 = vmatpush1.bf16.msra.mxu0 0
    %1064 = vmatprep.subr.bf16.mxu0 0
    %1065 = vmatpush1.bf16.msra.mxu0 0
    %1066 = vmatprep.subr.bf16.mxu0 0
    %1067 = vmatpush1.bf16.msra.mxu0 0
    %1068 = vmatprep.subr.bf16.mxu0 0
    %1069 = vmatpush1.bf16.msra.mxu0 0
    %1070 = vmatprep.subr.bf16.mxu0 0
    %1071 = vmatpush1.bf16.msra.mxu0 0
    %1072 = vmatprep.subr.bf16.mxu0 0
    %1073 = vmatpush1.bf16.msra.mxu0 0
    %1074 = vmatprep.mubr.bf16.mxu0 0
    %1075 = vmatmul.mubr.bf16.gmra.mrb[0].mxu0 %v1039
    %v1076 = vpop.f32.mrb[0].mxu0
    %v1077 = vadd.f32 %v1040, %v1076
    %v1078 = vpop.f32.mrb[0].mxu0
    %v1079 = vpop.f32.mrb[0].mxu0
    %v1080 = vadd.f32 %v1041, %v1079
    %v1081 = vpop.f32.mrb[0].mxu0
    %1082 = vdwg.mxu0
    %v1083 = vtanh.pop %v1077
    %v1084 = vtanh.pop %v1080
    %v1085 = vpack.c.bf16 %v1084, %v1083
    %v1086 = vld [vmem:[%s444] sm:$0xff]
    %v1087 = vld [vmem:[%s444 + $0x8] sm:$0xff]
    %1088 = vmatprep.subr.bf16.mxu0 0
    %1089 = vmatpush1.bf16.msra.mxu0 %v980
    %1090 = vmatprep.subr.bf16.mxu0 0
    %1091 = vmatpush1.bf16.msra.mxu0 %v981
    %1092 = vmatprep.subr.bf16.mxu0 0
    %1093 = vmatpush1.bf16.msra.mxu0 %v982
    %1094 = vmatprep.subr.bf16.mxu0 0
    %1095 = vmatpush1.bf16.msra.mxu0 %v983
    %1096 = vmatprep.subr.bf16.mxu0 0
    %1097 = vmatpush1.bf16.msra.mxu0 %v984
    %1098 = vmatprep.subr.bf16.mxu0 0
    %1099 = vmatpush1.bf16.msra.mxu0 %v985
    %1100 = vmatprep.subr.bf16.mxu0 0
    %1101 = vmatpush1.bf16.msra.mxu0 %v986
    %1102 = vmatprep.subr.bf16.mxu0 0
    %1103 = vmatpush1.bf16.msra.mxu0 %v987
    %1104 = vmatprep.subr.bf16.mxu0 0
    %1105 = vmatpush1.bf16.msra.mxu0 0
    %1106 = vmatprep.subr.bf16.mxu0 0
    %1107 = vmatpush1.bf16.msra.mxu0 0
    %1108 = vmatprep.subr.bf16.mxu0 0
    %1109 = vmatpush1.bf16.msra.mxu0 0
    %1110 = vmatprep.subr.bf16.mxu0 0
    %1111 = vmatpush1.bf16.msra.mxu0 0
    %1112 = vmatprep.subr.bf16.mxu0 0
    %1113 = vmatpush1.bf16.msra.mxu0 0
    %1114 = vmatprep.subr.bf16.mxu0 0
    %1115 = vmatpush1.bf16.msra.mxu0 0
    %1116 = vmatprep.subr.bf16.mxu0 0
    %1117 = vmatpush1.bf16.msra.mxu0 0
    %1118 = vmatprep.subr.bf16.mxu0 0
    %1119 = vmatpush1.bf16.msra.mxu0 0
    %1120 = vmatprep.mubr.bf16.mxu0 0
    %1121 = vmatmul.mubr.bf16.gmra.mrb[0].mxu0 %v1085
    %v1122 = vpop.f32.mrb[0].mxu0
    %v1123 = vadd.f32 %v1086, %v1122
    %v1124 = vpop.f32.mrb[0].mxu0
    %v1125 = vpop.f32.mrb[0].mxu0
    %v1126 = vadd.f32 %v1087, %v1125
    %v1127 = vpop.f32.mrb[0].mxu0
    %1128 = vdwg.mxu0
    %v1129 = vtanh.pop %v1123
    %v1130 = vtanh.pop %v1126
    %v1131 = vpack.c.bf16 %v1130, %v1129
    %v1132 = vld [vmem:[%s493] sm:$0xff]
    %v1133 = vld [vmem:[%s493 + $0x8] sm:$0xff]
    %1134 = vmatprep.subr.bf16.mxu0 0
    %1135 = vmatpush1.bf16.msra.mxu0 %v980
    %1136 = vmatprep.subr.bf16.mxu0 0
    %1137 = vmatpush1.bf16.msra.mxu0 %v981
    %1138 = vmatprep.subr.bf16.mxu0 0
    %1139 = vmatpush1.bf16.msra.mxu0 %v982
    %1140 = vmatprep.subr.bf16.mxu0 0
    %1141 = vmatpush1.bf16.msra.mxu0 %v983
    %1142 = vmatprep.subr.bf16.mxu0 0
    %1143 = vmatpush1.bf16.msra.mxu0 %v984
    %1144 = vmatprep.subr.bf16.mxu0 0
    %1145 = vmatpush1.bf16.msra.mxu0 %v985
    %1146 = vmatprep.subr.bf16.mxu0 0
    %1147 = vmatpush1.bf16.msra.mxu0 %v986
    %1148 = vmatprep.subr.bf16.mxu0 0
    %1149 = vmatpush1.bf16.msra.mxu0 %v987
    %1150 = vmatprep.subr.bf16.mxu0 0
    %1151 = vmatpush1.bf16.msra.mxu0 0
    %1152 = vmatprep.subr.bf16.mxu0 0
    %1153 = vmatpush1.bf16.msra.mxu0 0
    %1154 = vmatprep.subr.bf16.mxu0 0
    %1155 = vmatpush1.bf16.msra.mxu0 0
    %1156 = vmatprep.subr.bf16.mxu0 0
    %1157 = vmatpush1.bf16.msra.mxu0 0
    %1158 = vmatprep.subr.bf16.mxu0 0
    %1159 = vmatpush1.bf16.msra.mxu0 0
    %1160 = vmatprep.subr.bf16.mxu0 0
    %1161 = vmatpush1.bf16.msra.mxu0 0
    %1162 = vmatprep.subr.bf16.mxu0 0
    %1163 = vmatpush1.bf16.msra.mxu0 0
    %1164 = vmatprep.subr.bf16.mxu0 0
    %1165 = vmatpush1.bf16.msra.mxu0 0
    %1166 = vmatprep.mubr.bf16.mxu0 0
    %1167 = vmatmul.mubr.bf16.gmra.mrb[0].mxu0 %v1131
    %v1168 = vpop.f32.mrb[0].mxu0
    %v1169 = vadd.f32 %v1132, %v1168
    %v1170 = vpop.f32.mrb[0].mxu0
    %v1171 = vpop.f32.mrb[0].mxu0
    %v1172 = vadd.f32 %v1133, %v1171
    %v1173 = vpop.f32.mrb[0].mxu0
    %1174 = vdwg.mxu0
    %v1175 = vtanh.pop %v1169
    %v1176 = vtanh.pop %v1172
    %v1177 = vpack.c.bf16 %v1176, %v1175
    %v1178 = vld [vmem:[%s542] sm:$0xff]
    %v1179 = vld [vmem:[%s542 + $0x8] sm:$0xff]
    %1180 = vmatprep.subr.bf16.mxu0 0
    %1181 = vmatpush1.bf16.msra.mxu0 %v980
    %1182 = vmatprep.subr.bf16.mxu0 0
    %1183 = vmatpush1.bf16.msra.mxu0 %v981
    %1184 = vmatprep.subr.bf16.mxu0 0
    %1185 = vmatpush1.bf16.msra.mxu0 %v982
    %1186 = vmatprep.subr.bf16.mxu0 0
    %1187 = vmatpush1.bf16.msra.mxu0 %v983
    %1188 = vmatprep.subr.bf16.mxu0 0
    %1189 = vmatpush1.bf16.msra.mxu0 %v984
    %1190 = vmatprep.subr.bf16.mxu0 0
    %1191 = vmatpush1.bf16.msra.mxu0 %v985
    %1192 = vmatprep.subr.bf16.mxu0 0
    %1193 = vmatpush1.bf16.msra.mxu0 %v986
    %1194 = vmatprep.subr.bf16.mxu0 0
    %1195 = vmatpush1.bf16.msra.mxu0 %v987
    %1196 = vmatprep.subr.bf16.mxu0 0
    %1197 = vmatpush1.bf16.msra.mxu0 0
    %1198 = vmatprep.subr.bf16.mxu0 0
    %1199 = vmatpush1.bf16.msra.mxu0 0
    %1200 = vmatprep.subr.bf16.mxu0 0
    %1201 = vmatpush1.bf16.msra.mxu0 0
    %1202 = vmatprep.subr.bf16.mxu0 0
    %1203 = vmatpush1.bf16.msra.mxu0 0
    %1204 = vmatprep.subr.bf16.mxu0 0
    %1205 = vmatpush1.bf16.msra.mxu0 0
    %1206 = vmatprep.subr.bf16.mxu0 0
    %1207 = vmatpush1.bf16.msra.mxu0 0
    %1208 = vmatprep.subr.bf16.mxu0 0
    %1209 = vmatpush1.bf16.msra.mxu0 0
    %1210 = vmatprep.subr.bf16.mxu0 0
    %1211 = vmatpush1.bf16.msra.mxu0 0
    %1212 = vmatprep.mubr.bf16.mxu0 0
    %1213 = vmatmul.mubr.bf16.gmra.mrb[0].mxu0 %v1177
    %v1214 = vpop.f32.mrb[0].mxu0
    %v1215 = vadd.f32 %v1178, %v1214
    %v1216 = vpop.f32.mrb[0].mxu0
    %v1217 = vpop.f32.mrb[0].mxu0
    %v1218 = vadd.f32 %v1179, %v1217
    %v1219 = vpop.f32.mrb[0].mxu0
    %1220 = vdwg.mxu0
    %v1221 = vtanh.pop %v1215
    %v1222 = vtanh.pop %v1218
    %v1223 = vpack.c.bf16 %v1222, %v1221
    %v1224 = vld [vmem:[%s591] sm:$0xff]
    %v1225 = vld [vmem:[%s591 + $0x8] sm:$0xff]
    %1226 = vmatprep.subr.bf16.mxu0 0
    %1227 = vmatpush1.bf16.msra.mxu0 %v980
    %1228 = vmatprep.subr.bf16.mxu0 0
    %1229 = vmatpush1.bf16.msra.mxu0 %v981
    %1230 = vmatprep.subr.bf16.mxu0 0
    %1231 = vmatpush1.bf16.msra.mxu0 %v982
    %1232 = vmatprep.subr.bf16.mxu0 0
    %1233 = vmatpush1.bf16.msra.mxu0 %v983
    %1234 = vmatprep.subr.bf16.mxu0 0
    %1235 = vmatpush1.bf16.msra.mxu0 %v984
    %1236 = vmatprep.subr.bf16.mxu0 0
    %1237 = vmatpush1.bf16.msra.mxu0 %v985
    %1238 = vmatprep.subr.bf16.mxu0 0
    %1239 = vmatpush1.bf16.msra.mxu0 %v986
    %1240 = vmatprep.subr.bf16.mxu0 0
    %1241 = vmatpush1.bf16.msra.mxu0 %v987
    %1242 = vmatprep.subr.bf16.mxu0 0
    %1243 = vmatpush1.bf16.msra.mxu0 0
    %1244 = vmatprep.subr.bf16.mxu0 0
    %1245 = vmatpush1.bf16.msra.mxu0 0
    %1246 = vmatprep.subr.bf16.mxu0 0
    %1247 = vmatpush1.bf16.msra.mxu0 0
    %1248 = vmatprep.subr.bf16.mxu0 0
    %1249 = vmatpush1.bf16.msra.mxu0 0
    %1250 = vmatprep.subr.bf16.mxu0 0
    %1251 = vmatpush1.bf16.msra.mxu0 0
    %1252 = vmatprep.subr.bf16.mxu0 0
    %1253 = vmatpush1.bf16.msra.mxu0 0
    %1254 = vmatprep.subr.bf16.mxu0 0
    %1255 = vmatpush1.bf16.msra.mxu0 0
    %1256 = vmatprep.subr.bf16.mxu0 0
    %1257 = vmatpush1.bf16.msra.mxu0 0
    %1258 = vmatprep.mubr.bf16.mxu0 0
    %1259 = vmatmul.mubr.bf16.gmra.mrb[0].mxu0 %v1223
    %v1260 = vpop.f32.mrb[0].mxu0
    %v1261 = vadd.f32 %v1224, %v1260
    %v1262 = vpop.f32.mrb[0].mxu0
    %v1263 = vpop.f32.mrb[0].mxu0
    %v1264 = vadd.f32 %v1225, %v1263
    %v1265 = vpop.f32.mrb[0].mxu0
    %1266 = vdwg.mxu0
    %v1267 = vtanh.pop %v1261
    %v1268 = vtanh.pop %v1264
    %v1269 = vpack.c.bf16 %v1268, %v1267
    %v1270 = vld [vmem:[%s640] sm:$0xff]
    %v1271 = vld [vmem:[%s640 + $0x8] sm:$0xff]
    %1272 = vmatprep.subr.bf16.mxu0 0
    %1273 = vmatpush1.bf16.msra.mxu0 %v980
    %1274 = vmatprep.subr.bf16.mxu0 0
    %1275 = vmatpush1.bf16.msra.mxu0 %v981
    %1276 = vmatprep.subr.bf16.mxu0 0
    %1277 = vmatpush1.bf16.msra.mxu0 %v982
    %1278 = vmatprep.subr.bf16.mxu0 0
    %1279 = vmatpush1.bf16.msra.mxu0 %v983
    %1280 = vmatprep.subr.bf16.mxu0 0
    %1281 = vmatpush1.bf16.msra.mxu0 %v984
    %1282 = vmatprep.subr.bf16.mxu0 0
    %1283 = vmatpush1.bf16.msra.mxu0 %v985
    %1284 = vmatprep.subr.bf16.mxu0 0
    %1285 = vmatpush1.bf16.msra.mxu0 %v986
    %1286 = vmatprep.subr.bf16.mxu0 0
    %1287 = vmatpush1.bf16.msra.mxu0 %v987
    %1288 = vmatprep.subr.bf16.mxu0 0
    %1289 = vmatpush1.bf16.msra.mxu0 0
    %1290 = vmatprep.subr.bf16.mxu0 0
    %1291 = vmatpush1.bf16.msra.mxu0 0
    %1292 = vmatprep.subr.bf16.mxu0 0
    %1293 = vmatpush1.bf16.msra.mxu0 0
    %1294 = vmatprep.subr.bf16.mxu0 0
    %1295 = vmatpush1.bf16.msra.mxu0 0
    %1296 = vmatprep.subr.bf16.mxu0 0
    %1297 = vmatpush1.bf16.msra.mxu0 0
    %1298 = vmatprep.subr.bf16.mxu0 0
    %1299 = vmatpush1.bf16.msra.mxu0 0
    %1300 = vmatprep.subr.bf16.mxu0 0
    %1301 = vmatpush1.bf16.msra.mxu0 0
    %1302 = vmatprep.subr.bf16.mxu0 0
    %1303 = vmatpush1.bf16.msra.mxu0 0
    %1304 = vmatprep.mubr.bf16.mxu0 0
    %1305 = vmatmul.mubr.bf16.gmra.mrb[0].mxu0 %v1269
    %v1306 = vpop.f32.mrb[0].mxu0
    %v1307 = vadd.f32 %v1270, %v1306
    %v1308 = vpop.f32.mrb[0].mxu0
    %v1309 = vpop.f32.mrb[0].mxu0
    %v1310 = vadd.f32 %v1271, %v1309
    %v1311 = vpop.f32.mrb[0].mxu0
    %1312 = vdwg.mxu0
    %v1313 = vtanh.pop %v1307
    %v1314 = vtanh.pop %v1310
    %v1315 = vpack.c.bf16 %v1314, %v1313
    %v1316 = vld [vmem:[%s689] sm:$0xff]
    %v1317 = vld [vmem:[%s689 + $0x8] sm:$0xff]
    %1318 = vmatprep.subr.bf16.mxu0 0
    %1319 = vmatpush1.bf16.msra.mxu0 %v980
    %1320 = vmatprep.subr.bf16.mxu0 0
    %1321 = vmatpush1.bf16.msra.mxu0 %v981
    %1322 = vmatprep.subr.bf16.mxu0 0
    %1323 = vmatpush1.bf16.msra.mxu0 %v982
    %1324 = vmatprep.subr.bf16.mxu0 0
    %1325 = vmatpush1.bf16.msra.mxu0 %v983
    %1326 = vmatprep.subr.bf16.mxu0 0
    %1327 = vmatpush1.bf16.msra.mxu0 %v984
    %1328 = vmatprep.subr.bf16.mxu0 0
    %1329 = vmatpush1.bf16.msra.mxu0 %v985
    %1330 = vmatprep.subr.bf16.mxu0 0
    %1331 = vmatpush1.bf16.msra.mxu0 %v986
    %1332 = vmatprep.subr.bf16.mxu0 0
    %1333 = vmatpush1.bf16.msra.mxu0 %v987
    %1334 = vmatprep.subr.bf16.mxu0 0
    %1335 = vmatpush1.bf16.msra.mxu0 0
    %1336 = vmatprep.subr.bf16.mxu0 0
    %1337 = vmatpush1.bf16.msra.mxu0 0
    %1338 = vmatprep.subr.bf16.mxu0 0
    %1339 = vmatpush1.bf16.msra.mxu0 0
    %1340 = vmatprep.subr.bf16.mxu0 0
    %1341 = vmatpush1.bf16.msra.mxu0 0
    %1342 = vmatprep.subr.bf16.mxu0 0
    %1343 = vmatpush1.bf16.msra.mxu0 0
    %1344 = vmatprep.subr.bf16.mxu0 0
    %1345 = vmatpush1.bf16.msra.mxu0 0
    %1346 = vmatprep.subr.bf16.mxu0 0
    %1347 = vmatpush1.bf16.msra.mxu0 0
    %1348 = vmatprep.subr.bf16.mxu0 0
    %1349 = vmatpush1.bf16.msra.mxu0 0
    %1350 = vmatprep.mubr.bf16.mxu0 0
    %1351 = vmatmul.mubr.bf16.gmra.mrb[0].mxu0 %v1315
    %v1352 = vpop.f32.mrb[0].mxu0
    %v1353 = vadd.f32 %v1316, %v1352
    %v1354 = vpop.f32.mrb[0].mxu0
    %v1355 = vpop.f32.mrb[0].mxu0
    %v1356 = vadd.f32 %v1317, %v1355
    %v1357 = vpop.f32.mrb[0].mxu0
    %1358 = vdwg.mxu0
    %v1359 = vtanh.pop %v1353
    %v1360 = vtanh.pop %v1356
    %v1361 = vpack.c.bf16 %v1360, %v1359
    %v1362 = vld [vmem:[#allocation9] sm:$0xf]
    %v1363 = vld [vmem:[#allocation9 + $0x4] sm:$0xf]
    %v1364 = vld [vmem:[#allocation9 + $0x8] sm:$0xf]
    %v1365 = vld [vmem:[#allocation9 + $0xc] sm:$0xf]
    %v1366 = vld [vmem:[#allocation9 + $0x10] sm:$0xf]
    %v1367 = vld [vmem:[#allocation9 + $0x14] sm:$0xf]
    %v1368 = vld [vmem:[#allocation9 + $0x18] sm:$0xf]
    %v1369 = vld [vmem:[#allocation9 + $0x1c] sm:$0xf]
    %v1370 = vld [vmem:[#allocation9 + $0x20] sm:$0xf]
    %v1371 = vld [vmem:[#allocation9 + $0x24] sm:$0xf]
    %v1372 = vld [vmem:[#allocation9 + $0x28] sm:$0xf]
    %v1373 = vld [vmem:[#allocation9 + $0x2c] sm:$0xf]
    %v1374 = vld [vmem:[#allocation9 + $0x30] sm:$0xf]
    %v1375 = vld [vmem:[#allocation9 + $0x34] sm:$0xf]
    %v1376 = vld [vmem:[#allocation9 + $0x38] sm:$0xf]
    %v1377 = vld [vmem:[#allocation9 + $0x3c] sm:$0xf]
    %v1378 = vld [vmem:[%s8] sm:$0x1]
    %v1380 = vlaneseq
    %v1381 = vshrl.u32 %v1380, 7
    %v1382 = vsub.s32 0, %v1381
    %v1383 = vrot.slane %v1378, %v1382
    %v1401 = vunpack.c.l.b16 %v1362
    %v1402 = vunpack.c.l.b16 %v1363
    %v1403 = vunpack.c.l.b16 %v1364
    %v1404 = vunpack.c.l.b16 %v1365
    %v1405 = vunpack.c.l.b16 %v1366
    %v1406 = vunpack.c.l.b16 %v1367
    %v1407 = vunpack.c.l.b16 %v1368
    %v1408 = vunpack.c.l.b16 %v1369
    %v1409 = vunpack.c.l.b16 %v1370
    %v1410 = vunpack.c.l.b16 %v1371
    %v1411 = vunpack.c.l.b16 %v1372
    %v1412 = vunpack.c.l.b16 %v1373
    %v1413 = vunpack.c.l.b16 %v1374
    %v1414 = vunpack.c.l.b16 %v1375
    %v1415 = vunpack.c.l.b16 %v1376
    %v1416 = vunpack.c.l.b16 %v1377
    %v1417 = vpack.c.b16 %v1402, %v1401
    %v1418 = vpack.c.b16 %v1404, %v1403
    %v1419 = vpack.c.b16 %v1406, %v1405
    %v1420 = vpack.c.b16 %v1408, %v1407
    %v1421 = vpack.c.b16 %v1410, %v1409
    %v1422 = vpack.c.b16 %v1412, %v1411
    %v1423 = vpack.c.b16 %v1414, %v1413
    %v1424 = vpack.c.b16 %v1416, %v1415
    %1433 = vmatprep.subr.bf16.mxu0 0
    %1434 = vmatpush1.bf16.msra.mxu0 %v1417
    %1435 = vmatprep.subr.bf16.mxu0 0
    %1436 = vmatpush1.bf16.msra.mxu0 %v1418
    %1437 = vmatprep.subr.bf16.mxu0 0
    %1438 = vmatpush1.bf16.msra.mxu0 %v1419
    %1439 = vmatprep.subr.bf16.mxu0 0
    %1440 = vmatpush1.bf16.msra.mxu0 %v1420
    %1441 = vmatprep.subr.bf16.mxu0 0
    %1442 = vmatpush1.bf16.msra.mxu0 %v1421
    %1443 = vmatprep.subr.bf16.mxu0 0
    %1444 = vmatpush1.bf16.msra.mxu0 %v1422
    %1445 = vmatprep.subr.bf16.mxu0 0
    %1446 = vmatpush1.bf16.msra.mxu0 %v1423
    %1447 = vmatprep.subr.bf16.mxu0 0
    %1448 = vmatpush1.bf16.msra.mxu0 %v1424
    %1449 = vmatprep.subr.bf16.mxu0 0
    %1450 = vmatpush1.bf16.msra.mxu0 0
    %1451 = vmatprep.subr.bf16.mxu0 0
    %1452 = vmatpush1.bf16.msra.mxu0 0
    %1453 = vmatprep.subr.bf16.mxu0 0
    %1454 = vmatpush1.bf16.msra.mxu0 0
    %1455 = vmatprep.subr.bf16.mxu0 0
    %1456 = vmatpush1.bf16.msra.mxu0 0
    %1457 = vmatprep.subr.bf16.mxu0 0
    %1458 = vmatpush1.bf16.msra.mxu0 0
    %1459 = vmatprep.subr.bf16.mxu0 0
    %1460 = vmatpush1.bf16.msra.mxu0 0
    %1461 = vmatprep.subr.bf16.mxu0 0
    %1462 = vmatpush1.bf16.msra.mxu0 0
    %1463 = vmatprep.subr.bf16.mxu0 0
    %1464 = vmatpush1.bf16.msra.mxu0 0
    %1465 = vmatprep.mubr.bf16.mxu0 0
    %1466 = vmatmul.mubr.bf16.gmra.mrb[0].mxu0 %v1361
    %v1467 = vpop.f32.mrb[0].mxu0
    %v1468 = vadd.f32 %v1383, %v1467
    %v1469 = vpop.f32.mrb[0].mxu0
    %v1470 = vpop.f32.mrb[0].mxu0
    %v1471 = vadd.f32 %v1383, %v1470
    %v1472 = vpop.f32.mrb[0].mxu0
    %1473 = vdwg.mxu0
    %1474 = vst [vmem:[#allocation10] sm:$0xff] %v1468
    %1475 = vst [vmem:[#allocation10 + $0x8] sm:$0xff] %v1471
    // Predicated region
    $region50: #{tpu_custom_call.1} parent=1 // pred_check
      _
    $region51: #{tpu_custom_call.1} parent=1 // pred_check_branch
      %1477 = sbr.rel (0) target = $region53
    $region52: #{tpu_custom_call.1} parent=1 // pred_region
      %s1479 = ssub.s32 256, 256
      %1480 = vsyncadd [#allocation6], %s1479
      %s1481 = sshll.u32 [#allocation10], 4
      %s1482 = int_to_ptr.vmem [resolvable:$true] %s1481
      %1487 = dma.vmem_to_hbm [thread:$0]  %s1482, 256, %s9, [#allocation6], 128, 128, 8
    $region53: #{tpu_custom_call.1} parent=1 // pred_fallthru
      _
    // Predicated region
    $region54: #{tpu_custom_call.1} parent=1 // pred_check
      _
    $region55: #{tpu_custom_call.1} parent=1 // pred_check_branch
      %1489 = sbr.rel (0) target = $region57
    $region56: #{tpu_custom_call.1} parent=1 // pred_region
      %1490 = dma.done [#allocation6], 256
    $region57: #{tpu_custom_call.1} parent=1 // pred_fallthru
      _
    %1491 = vsyncpa [#allocation5], 1
    %1492 = vsyncpa [#allocation8], 1
    %1493 = vsyncpa [#allocation6], 1

</llo_original>
